<compile_context>
chip_gen: v7x
topology: tpu7x:2x2x1
jax: 0.10.0
libtpu: 0.0.40
codegen_flags: <defaults>
</compile_context>

<pallas_src>
import functools

import jax
import jax.numpy as jnp
import numpy as np
from jax import lax
from jax.experimental import pallas as pl
from jax.experimental.pallas import tpu as pltpu


# ----------------------------------------------------------------------------
# Pallas kernel: one-shot input projection, unrolled LSTM recurrence, and the
# flattening Linear fused as   acc += h_t @ W_lin^T[t]   every timestep.
# ----------------------------------------------------------------------------
def _lstm_linear_kernel(x_ref,       # (T*B, D_in)      VMEM  (time-major rows: t*B + b)
                        wih_ref,     # (D_in, 4H)       VMEM  (= W_ih^T)
                        whh_ref,     # (H, 4H)          VMEM  (= W_hh^T)
                        bias_ref,    # (1, 4H)          VMEM  (= b_ih + b_hh)
                        wlin_ref,    # (T, H, OutF)     VMEM  (= W_lin^T, split per t)
                        blin_ref,    # (1, OutF)        VMEM
                        out_ref):    # (B, OutF)        VMEM
    T, H, out_f = wlin_ref.shape
    B = out_ref.shape[0]

    # Loop-invariant loads, hoisted once.
    whh = whh_ref[...]                                    # (H, 4H)

    # Input projection + combined bias for ALL timesteps in ONE MXU matmul,
    # off the serial critical path: xproj[t*B + b] = x[b, t] @ Wih^T + b_ih + b_hh.
    xproj = (
        jnp.dot(x_ref[...], wih_ref[...], preferred_element_type=jnp.float32)
        + bias_ref[...]
    )                                                     # (T*B, 4H)

    # Static lane mask selecting the g (cell-candidate) block of the fused gate
    # tile. PyTorch LSTM gate order along the 4H axis: i, f, g, o.
    lane = lax.broadcasted_iota(jnp.int32, (B, 4 * H), 1)
    g_mask = (lane >= 2 * H) & (lane < 3 * H)

    h = jnp.zeros((B, H), jnp.float32)
    c = jnp.zeros((B, H), jnp.float32)
    acc = jnp.zeros((B, out_f), jnp.float32)

    # T is small and static: fully unroll so adjacent steps' h@Whh, EUP
    # nonlinearities and acc += h@Wlin can interleave; all slices are static.
    for t in range(T):
        g_lin = xproj[t * B:(t + 1) * B, :]               # (B, 4H) static slice
        if t == 0:
            gates = g_lin                                  # h0 == 0: skip h @ Whh
        else:
            gates = g_lin + jnp.dot(h, whh, preferred_element_type=jnp.float32)

        # Full-vreg EUP passes; a single select picks tanh for the g block.
        act = jnp.where(g_mask, jnp.tanh(gates), jax.nn.sigmoid(gates))
        i_g = act[:, 0 * H:1 * H]
        f_g = act[:, 1 * H:2 * H]
        g_g = act[:, 2 * H:3 * H]
        o_g = act[:, 3 * H:4 * H]

        c = f_g * c + i_g * g_g
        h = o_g * jnp.tanh(c)

        # Fused Linear over the flattened (T, H) axis: column block t of hs_flat
        # multiplies the matching (H, OutF) slab of W_lin^T (static leading index).
        acc = acc + jnp.dot(h, wlin_ref[t], preferred_element_type=jnp.float32)

    out_ref[...] = (acc + blin_ref[...]).astype(out_ref.dtype)


# ----------------------------------------------------------------------------
# Parameter prep (run ONCE, outside the jitted forward).
# ----------------------------------------------------------------------------
def prepare_params(params, input_shape):
    wih, whh, b_ih, b_hh, wlin, blin = params
    T_in = input_shape[0]
    H = whh.shape[1]
    out_f = wlin.shape[0]
    wih_t = jnp.transpose(wih)                            # (D, 4H)
    whh_t = jnp.transpose(whh)                            # (H, 4H)
    bias = (b_ih + b_hh).reshape(1, 4 * H)                # (1, 4H)
    wlin_3d = jnp.transpose(wlin).reshape(T_in, H, out_f)  # (T, H, OutF)
    blin_2d = blin.reshape(1, out_f)                      # (1, OutF)
    return wih_t, whh_t, bias, wlin_3d, blin_2d


def seq2seq4_forward(x, prepped, output_shape):
    """x: (B, T_in, D_in) float32 -> (B, T_out, D_out) float32."""
    B, T, D = x.shape
    T_out, D_out = output_shape
    wih_t, whh_t, bias, wlin_3d, blin_2d = prepped
    out_f = T_out * D_out

    # Time-major flattened rows (row index = t*B + b); tiny per-call reshuffle.
    x_tm2d = jnp.transpose(x, (1, 0, 2)).reshape(T * B, D)

    vmem = pl.BlockSpec(memory_space=pltpu.MemorySpace.VMEM)
    out_flat = pl.pallas_call(
        _lstm_linear_kernel,
        out_shape=jax.ShapeDtypeStruct((B, out_f), jnp.float32),
        in_specs=[vmem] * 6,
        out_specs=vmem,
    )(x_tm2d, wih_t, whh_t, bias, wlin_3d, blin_2d)

    return out_flat.reshape(B, T_out, D_out)


# ----------------------------------------------------------------------------
# Pure-JAX reference (same math) for a correctness check.
# ----------------------------------------------------------------------------
def seq2seq4_reference(x, params, output_shape):
    B, T, D = x.shape
    T_out, D_out = output_shape
    wih, whh, b_ih, b_hh, wlin, blin = params
    H = whh.shape[1]

    def cell(carry, x_t):
        h, c = carry
        gates = x_t @ wih.T + b_ih + h @ whh.T + b_hh
        i_g, f_g, g_g, o_g = jnp.split(gates, 4, axis=-1)
        i_g = jax.nn.sigmoid(i_g)
        f_g = jax.nn.sigmoid(f_g)
        g_g = jnp.tanh(g_g)
        o_g = jax.nn.sigmoid(o_g)
        c_new = f_g * c + i_g * g_g
        h_new = o_g * jnp.tanh(c_new)
        return (h_new, c_new), h_new

    h0 = jnp.zeros((B, H), jnp.float32)
    c0 = jnp.zeros((B, H), jnp.float32)
    _, hs = lax.scan(cell, (h0, c0), jnp.transpose(x, (1, 0, 2)))  # (T, B, H)
    hs = jnp.transpose(hs, (1, 0, 2)).reshape(B, T * H)            # (B, T*H)
    out = hs @ wlin.T + blin
    return out.reshape(B, T_out, D_out)


def init_params(key, input_shape, output_shape, hidden_size):
    T_in, D_in = input_shape
    T_out, D_out = output_shape
    H = hidden_size
    k = jax.random.split(key, 6)
    s_rnn = 1.0 / np.sqrt(H)
    s_lin = 1.0 / np.sqrt(T_in * H)
    wih = jax.random.uniform(k[0], (4 * H, D_in), jnp.float32, -s_rnn, s_rnn)
    whh = jax.random.uniform(k[1], (4 * H, H), jnp.float32, -s_rnn, s_rnn)
    b_ih = jax.random.uniform(k[2], (4 * H,), jnp.float32, -s_rnn, s_rnn)
    b_hh = jax.random.uniform(k[3], (4 * H,), jnp.float32, -s_rnn, s_rnn)
    wlin = jax.random.uniform(k[4], (T_out * D_out, T_in * H), jnp.float32, -s_lin, s_lin)
    blin = jax.random.uniform(k[5], (T_out * D_out,), jnp.float32, -s_lin, s_lin)
    return (wih, whh, b_ih, b_hh, wlin, blin)


if __name__ == "__main__":
    # Small shapes consistent with the module:
    #   input_shape  = (T_in, D_in) = (8, 16)
    #   output_shape = (T_out, D_out) = (8, 16)
    #   hidden_size  = 32, batch = 2
    input_shape = (8, 16)
    output_shape = (8, 16)
    hidden_size = 32
    batch = 2

    key = jax.random.PRNGKey(0)
    k_x, k_p = jax.random.split(key)
    x = jax.random.normal(k_x, (batch,) + input_shape, jnp.float32)
    params = init_params(k_p, input_shape, output_shape, hidden_size)

    # Parameter transposes / reshapes done once, outside the jitted forward.
    prepped = jax.tree_util.tree_map(
        jax.block_until_ready, prepare_params(params, input_shape)
    )

    fwd = jax.jit(functools.partial(seq2seq4_forward, output_shape=output_shape))
    out = fwd(x, prepped)
    jax.block_until_ready(out)

    ref = seq2seq4_reference(x, params, output_shape)
    np.testing.assert_allclose(np.asarray(out), np.asarray(ref), rtol=1e-4, atol=1e-5)

    print("KERNEL_OK")
</pallas_src>

<mosaic_0001>
module attributes {stable_mosaic.version = 11 : i64} {
  func.func @_lstm_linear_kernel(%arg0: memref<16x16xf32, #tpu.memory_space<vmem>>, %arg1: memref<16x128xf32, #tpu.memory_space<vmem>>, %arg2: memref<32x128xf32, #tpu.memory_space<vmem>>, %arg3: memref<1x128xf32, #tpu.memory_space<vmem>>, %arg4: memref<8x32x128xf32, #tpu.memory_space<vmem>>, %arg5: memref<1x128xf32, #tpu.memory_space<vmem>>, %arg6: memref<2x128xf32, #tpu.memory_space<vmem>>) attributes {dimension_semantics = [], scalar_prefetch = 0 : i64, scratch_operands = 0 : i64, tpu.core_type = #tpu.core_type<tc>} {
    %c0 = arith.constant 0 : index
    %c0_0 = arith.constant 0 : index
    %0 = vector.load %arg2[%c0, %c0_0] : memref<32x128xf32, #tpu.memory_space<vmem>>, vector<32x128xf32>
    %c0_1 = arith.constant 0 : index
    %c0_2 = arith.constant 0 : index
    %1 = vector.load %arg0[%c0_1, %c0_2] : memref<16x16xf32, #tpu.memory_space<vmem>>, vector<16x16xf32>
    %c0_3 = arith.constant 0 : index
    %c0_4 = arith.constant 0 : index
    %2 = vector.load %arg1[%c0_3, %c0_4] : memref<16x128xf32, #tpu.memory_space<vmem>>, vector<16x128xf32>
    %cst = arith.constant dense<0.000000e+00> : vector<16x128xf32>
    %3 = tpu.matmul %1, %2, %cst {dimension_numbers = #tpu.dot_dimension_numbers<[1], [0], [0], [1], [0, 0, 1, 1], [], []>} : vector<16x16xf32>, vector<16x128xf32>, vector<16x128xf32> -> vector<16x128xf32>
    %c0_5 = arith.constant 0 : index
    %c0_6 = arith.constant 0 : index
    %4 = vector.load %arg3[%c0_5, %c0_6] : memref<1x128xf32, #tpu.memory_space<vmem>>, vector<1x128xf32>
    %5 = vector.broadcast %4 : vector<1x128xf32> to vector<16x128xf32>
    %6 = arith.addf %3, %5 : vector<16x128xf32>
    %7 = tpu.iota {dimensions = array<i32: 1>} : vector<2x128xi32>
    %c64_i32 = arith.constant 64 : i32
    %8 = vector.broadcast %c64_i32 : i32 to vector<2x128xi32>
    %9 = arith.cmpi sge, %7, %8 : vector<2x128xi32>
    %c96_i32 = arith.constant 96 : i32
    %10 = vector.broadcast %c96_i32 : i32 to vector<2x128xi32>
    %11 = arith.cmpi slt, %7, %10 : vector<2x128xi32>
    %12 = arith.andi %9, %11 : vector<2x128xi1>
    %cst_7 = arith.constant 0.000000e+00 : f32
    %13 = vector.broadcast %cst_7 : f32 to vector<2x32xf32>
    %cst_8 = arith.constant 0.000000e+00 : f32
    %14 = vector.broadcast %cst_8 : f32 to vector<2x128xf32>
    %15 = vector.extract_strided_slice %6 {offsets = [0, 0], sizes = [2, 128], strides = [1, 1]} : vector<16x128xf32> to vector<2x128xf32>
    %16 = math.tanh %15 : vector<2x128xf32>
    %17 = arith.negf %15 : vector<2x128xf32>
    %18 = math.exp %17 : vector<2x128xf32>
    %cst_9 = arith.constant 1.000000e+00 : f32
    %19 = vector.broadcast %cst_9 : f32 to vector<2x128xf32>
    %20 = arith.addf %19, %18 : vector<2x128xf32>
    %21 = arith.divf %19, %20 : vector<2x128xf32>
    %22 = arith.select %12, %16, %21 : vector<2x128xi1>, vector<2x128xf32>
    %23 = vector.extract_strided_slice %22 {offsets = [0, 0], sizes = [2, 32], strides = [1, 1]} : vector<2x128xf32> to vector<2x32xf32>
    %24 = vector.extract_strided_slice %22 {offsets = [0, 32], sizes = [2, 32], strides = [1, 1]} : vector<2x128xf32> to vector<2x32xf32>
    %25 = vector.extract_strided_slice %22 {offsets = [0, 64], sizes = [2, 32], strides = [1, 1]} : vector<2x128xf32> to vector<2x32xf32>
    %26 = vector.extract_strided_slice %22 {offsets = [0, 96], sizes = [2, 32], strides = [1, 1]} : vector<2x128xf32> to vector<2x32xf32>
    %27 = arith.mulf %24, %13 : vector<2x32xf32>
    %28 = arith.mulf %23, %25 : vector<2x32xf32>
    %29 = arith.addf %27, %28 : vector<2x32xf32>
    %30 = math.tanh %29 : vector<2x32xf32>
    %31 = arith.mulf %26, %30 : vector<2x32xf32>
    %c0_10 = arith.constant 0 : index
    %c0_11 = arith.constant 0 : index
    %c0_12 = arith.constant 0 : index
    %32 = vector.load %arg4[%c0_10, %c0_11, %c0_12] : memref<8x32x128xf32, #tpu.memory_space<vmem>>, vector<1x32x128xf32>
    %33 = vector.shape_cast %32 : vector<1x32x128xf32> to vector<32x128xf32>
    %cst_13 = arith.constant dense<0.000000e+00> : vector<2x128xf32>
    %34 = tpu.matmul %31, %33, %cst_13 {dimension_numbers = #tpu.dot_dimension_numbers<[1], [0], [0], [1], [0, 0, 1, 1], [], []>} : vector<2x32xf32>, vector<32x128xf32>, vector<2x128xf32> -> vector<2x128xf32>
    %35 = arith.addf %14, %34 : vector<2x128xf32>
    %36 = vector.extract_strided_slice %6 {offsets = [2, 0], sizes = [2, 128], strides = [1, 1]} : vector<16x128xf32> to vector<2x128xf32>
    %cst_14 = arith.constant dense<0.000000e+00> : vector<2x128xf32>
    %37 = tpu.matmul %31, %0, %cst_14 {dimension_numbers = #tpu.dot_dimension_numbers<[1], [0], [0], [1], [0, 0, 1, 1], [], []>} : vector<2x32xf32>, vector<32x128xf32>, vector<2x128xf32> -> vector<2x128xf32>
    %38 = arith.addf %36, %37 : vector<2x128xf32>
    %39 = math.tanh %38 : vector<2x128xf32>
    %40 = arith.negf %38 : vector<2x128xf32>
    %41 = math.exp %40 : vector<2x128xf32>
    %cst_15 = arith.constant 1.000000e+00 : f32
    %42 = vector.broadcast %cst_15 : f32 to vector<2x128xf32>
    %43 = arith.addf %42, %41 : vector<2x128xf32>
    %44 = arith.divf %42, %43 : vector<2x128xf32>
    %45 = arith.select %12, %39, %44 : vector<2x128xi1>, vector<2x128xf32>
    %46 = vector.extract_strided_slice %45 {offsets = [0, 0], sizes = [2, 32], strides = [1, 1]} : vector<2x128xf32> to vector<2x32xf32>
    %47 = vector.extract_strided_slice %45 {offsets = [0, 32], sizes = [2, 32], strides = [1, 1]} : vector<2x128xf32> to vector<2x32xf32>
    %48 = vector.extract_strided_slice %45 {offsets = [0, 64], sizes = [2, 32], strides = [1, 1]} : vector<2x128xf32> to vector<2x32xf32>
    %49 = vector.extract_strided_slice %45 {offsets = [0, 96], sizes = [2, 32], strides = [1, 1]} : vector<2x128xf32> to vector<2x32xf32>
    %50 = arith.mulf %47, %29 : vector<2x32xf32>
    %51 = arith.mulf %46, %48 : vector<2x32xf32>
    %52 = arith.addf %50, %51 : vector<2x32xf32>
    %53 = math.tanh %52 : vector<2x32xf32>
    %54 = arith.mulf %49, %53 : vector<2x32xf32>
    %c1 = arith.constant 1 : index
    %c0_16 = arith.constant 0 : index
    %c0_17 = arith.constant 0 : index
    %55 = vector.load %arg4[%c1, %c0_16, %c0_17] : memref<8x32x128xf32, #tpu.memory_space<vmem>>, vector<1x32x128xf32>
    %56 = vector.shape_cast %55 : vector<1x32x128xf32> to vector<32x128xf32>
    %cst_18 = arith.constant dense<0.000000e+00> : vector<2x128xf32>
    %57 = tpu.matmul %54, %56, %cst_18 {dimension_numbers = #tpu.dot_dimension_numbers<[1], [0], [0], [1], [0, 0, 1, 1], [], []>} : vector<2x32xf32>, vector<32x128xf32>, vector<2x128xf32> -> vector<2x128xf32>
    %58 = arith.addf %35, %57 : vector<2x128xf32>
    %59 = vector.extract_strided_slice %6 {offsets = [4, 0], sizes = [2, 128], strides = [1, 1]} : vector<16x128xf32> to vector<2x128xf32>
    %cst_19 = arith.constant dense<0.000000e+00> : vector<2x128xf32>
    %60 = tpu.matmul %54, %0, %cst_19 {dimension_numbers = #tpu.dot_dimension_numbers<[1], [0], [0], [1], [0, 0, 1, 1], [], []>} : vector<2x32xf32>, vector<32x128xf32>, vector<2x128xf32> -> vector<2x128xf32>
    %61 = arith.addf %59, %60 : vector<2x128xf32>
    %62 = math.tanh %61 : vector<2x128xf32>
    %63 = arith.negf %61 : vector<2x128xf32>
    %64 = math.exp %63 : vector<2x128xf32>
    %cst_20 = arith.constant 1.000000e+00 : f32
    %65 = vector.broadcast %cst_20 : f32 to vector<2x128xf32>
    %66 = arith.addf %65, %64 : vector<2x128xf32>
    %67 = arith.divf %65, %66 : vector<2x128xf32>
    %68 = arith.select %12, %62, %67 : vector<2x128xi1>, vector<2x128xf32>
    %69 = vector.extract_strided_slice %68 {offsets = [0, 0], sizes = [2, 32], strides = [1, 1]} : vector<2x128xf32> to vector<2x32xf32>
    %70 = vector.extract_strided_slice %68 {offsets = [0, 32], sizes = [2, 32], strides = [1, 1]} : vector<2x128xf32> to vector<2x32xf32>
    %71 = vector.extract_strided_slice %68 {offsets = [0, 64], sizes = [2, 32], strides = [1, 1]} : vector<2x128xf32> to vector<2x32xf32>
    %72 = vector.extract_strided_slice %68 {offsets = [0, 96], sizes = [2, 32], strides = [1, 1]} : vector<2x128xf32> to vector<2x32xf32>
    %73 = arith.mulf %70, %52 : vector<2x32xf32>
    %74 = arith.mulf %69, %71 : vector<2x32xf32>
    %75 = arith.addf %73, %74 : vector<2x32xf32>
    %76 = math.tanh %75 : vector<2x32xf32>
    %77 = arith.mulf %72, %76 : vector<2x32xf32>
    %c2 = arith.constant 2 : index
    %c0_21 = arith.constant 0 : index
    %c0_22 = arith.constant 0 : index
    %78 = vector.load %arg4[%c2, %c0_21, %c0_22] : memref<8x32x128xf32, #tpu.memory_space<vmem>>, vector<1x32x128xf32>
    %79 = vector.shape_cast %78 : vector<1x32x128xf32> to vector<32x128xf32>
    %cst_23 = arith.constant dense<0.000000e+00> : vector<2x128xf32>
    %80 = tpu.matmul %77, %79, %cst_23 {dimension_numbers = #tpu.dot_dimension_numbers<[1], [0], [0], [1], [0, 0, 1, 1], [], []>} : vector<2x32xf32>, vector<32x128xf32>, vector<2x128xf32> -> vector<2x128xf32>
    %81 = arith.addf %58, %80 : vector<2x128xf32>
    %82 = vector.extract_strided_slice %6 {offsets = [6, 0], sizes = [2, 128], strides = [1, 1]} : vector<16x128xf32> to vector<2x128xf32>
    %cst_24 = arith.constant dense<0.000000e+00> : vector<2x128xf32>
    %83 = tpu.matmul %77, %0, %cst_24 {dimension_numbers = #tpu.dot_dimension_numbers<[1], [0], [0], [1], [0, 0, 1, 1], [], []>} : vector<2x32xf32>, vector<32x128xf32>, vector<2x128xf32> -> vector<2x128xf32>
    %84 = arith.addf %82, %83 : vector<2x128xf32>
    %85 = math.tanh %84 : vector<2x128xf32>
    %86 = arith.negf %84 : vector<2x128xf32>
    %87 = math.exp %86 : vector<2x128xf32>
    %cst_25 = arith.constant 1.000000e+00 : f32
    %88 = vector.broadcast %cst_25 : f32 to vector<2x128xf32>
    %89 = arith.addf %88, %87 : vector<2x128xf32>
    %90 = arith.divf %88, %89 : vector<2x128xf32>
    %91 = arith.select %12, %85, %90 : vector<2x128xi1>, vector<2x128xf32>
    %92 = vector.extract_strided_slice %91 {offsets = [0, 0], sizes = [2, 32], strides = [1, 1]} : vector<2x128xf32> to vector<2x32xf32>
    %93 = vector.extract_strided_slice %91 {offsets = [0, 32], sizes = [2, 32], strides = [1, 1]} : vector<2x128xf32> to vector<2x32xf32>
    %94 = vector.extract_strided_slice %91 {offsets = [0, 64], sizes = [2, 32], strides = [1, 1]} : vector<2x128xf32> to vector<2x32xf32>
    %95 = vector.extract_strided_slice %91 {offsets = [0, 96], sizes = [2, 32], strides = [1, 1]} : vector<2x128xf32> to vector<2x32xf32>
    %96 = arith.mulf %93, %75 : vector<2x32xf32>
    %97 = arith.mulf %92, %94 : vector<2x32xf32>
    %98 = arith.addf %96, %97 : vector<2x32xf32>
    %99 = math.tanh %98 : vector<2x32xf32>
    %100 = arith.mulf %95, %99 : vector<2x32xf32>
    %c3 = arith.constant 3 : index
    %c0_26 = arith.constant 0 : index
    %c0_27 = arith.constant 0 : index
    %101 = vector.load %arg4[%c3, %c0_26, %c0_27] : memref<8x32x128xf32, #tpu.memory_space<vmem>>, vector<1x32x128xf32>
    %102 = vector.shape_cast %101 : vector<1x32x128xf32> to vector<32x128xf32>
    %cst_28 = arith.constant dense<0.000000e+00> : vector<2x128xf32>
    %103 = tpu.matmul %100, %102, %cst_28 {dimension_numbers = #tpu.dot_dimension_numbers<[1], [0], [0], [1], [0, 0, 1, 1], [], []>} : vector<2x32xf32>, vector<32x128xf32>, vector<2x128xf32> -> vector<2x128xf32>
    %104 = arith.addf %81, %103 : vector<2x128xf32>
    %105 = vector.extract_strided_slice %6 {offsets = [8, 0], sizes = [2, 128], strides = [1, 1]} : vector<16x128xf32> to vector<2x128xf32>
    %cst_29 = arith.constant dense<0.000000e+00> : vector<2x128xf32>
    %106 = tpu.matmul %100, %0, %cst_29 {dimension_numbers = #tpu.dot_dimension_numbers<[1], [0], [0], [1], [0, 0, 1, 1], [], []>} : vector<2x32xf32>, vector<32x128xf32>, vector<2x128xf32> -> vector<2x128xf32>
    %107 = arith.addf %105, %106 : vector<2x128xf32>
    %108 = math.tanh %107 : vector<2x128xf32>
    %109 = arith.negf %107 : vector<2x128xf32>
    %110 = math.exp %109 : vector<2x128xf32>
    %cst_30 = arith.constant 1.000000e+00 : f32
    %111 = vector.broadcast %cst_30 : f32 to vector<2x128xf32>
    %112 = arith.addf %111, %110 : vector<2x128xf32>
    %113 = arith.divf %111, %112 : vector<2x128xf32>
    %114 = arith.select %12, %108, %113 : vector<2x128xi1>, vector<2x128xf32>
    %115 = vector.extract_strided_slice %114 {offsets = [0, 0], sizes = [2, 32], strides = [1, 1]} : vector<2x128xf32> to vector<2x32xf32>
    %116 = vector.extract_strided_slice %114 {offsets = [0, 32], sizes = [2, 32], strides = [1, 1]} : vector<2x128xf32> to vector<2x32xf32>
    %117 = vector.extract_strided_slice %114 {offsets = [0, 64], sizes = [2, 32], strides = [1, 1]} : vector<2x128xf32> to vector<2x32xf32>
    %118 = vector.extract_strided_slice %114 {offsets = [0, 96], sizes = [2, 32], strides = [1, 1]} : vector<2x128xf32> to vector<2x32xf32>
    %119 = arith.mulf %116, %98 : vector<2x32xf32>
    %120 = arith.mulf %115, %117 : vector<2x32xf32>
    %121 = arith.addf %119, %120 : vector<2x32xf32>
    %122 = math.tanh %121 : vector<2x32xf32>
    %123 = arith.mulf %118, %122 : vector<2x32xf32>
    %c4 = arith.constant 4 : index
    %c0_31 = arith.constant 0 : index
    %c0_32 = arith.constant 0 : index
    %124 = vector.load %arg4[%c4, %c0_31, %c0_32] : memref<8x32x128xf32, #tpu.memory_space<vmem>>, vector<1x32x128xf32>
    %125 = vector.shape_cast %124 : vector<1x32x128xf32> to vector<32x128xf32>
    %cst_33 = arith.constant dense<0.000000e+00> : vector<2x128xf32>
    %126 = tpu.matmul %123, %125, %cst_33 {dimension_numbers = #tpu.dot_dimension_numbers<[1], [0], [0], [1], [0, 0, 1, 1], [], []>} : vector<2x32xf32>, vector<32x128xf32>, vector<2x128xf32> -> vector<2x128xf32>
    %127 = arith.addf %104, %126 : vector<2x128xf32>
    %128 = vector.extract_strided_slice %6 {offsets = [10, 0], sizes = [2, 128], strides = [1, 1]} : vector<16x128xf32> to vector<2x128xf32>
    %cst_34 = arith.constant dense<0.000000e+00> : vector<2x128xf32>
    %129 = tpu.matmul %123, %0, %cst_34 {dimension_numbers = #tpu.dot_dimension_numbers<[1], [0], [0], [1], [0, 0, 1, 1], [], []>} : vector<2x32xf32>, vector<32x128xf32>, vector<2x128xf32> -> vector<2x128xf32>
    %130 = arith.addf %128, %129 : vector<2x128xf32>
    %131 = math.tanh %130 : vector<2x128xf32>
    %132 = arith.negf %130 : vector<2x128xf32>
    %133 = math.exp %132 : vector<2x128xf32>
    %cst_35 = arith.constant 1.000000e+00 : f32
    %134 = vector.broadcast %cst_35 : f32 to vector<2x128xf32>
    %135 = arith.addf %134, %133 : vector<2x128xf32>
    %136 = arith.divf %134, %135 : vector<2x128xf32>
    %137 = arith.select %12, %131, %136 : vector<2x128xi1>, vector<2x128xf32>
    %138 = vector.extract_strided_slice %137 {offsets = [0, 0], sizes = [2, 32], strides = [1, 1]} : vector<2x128xf32> to vector<2x32xf32>
    %139 = vector.extract_strided_slice %137 {offsets = [0, 32], sizes = [2, 32], strides = [1, 1]} : vector<2x128xf32> to vector<2x32xf32>
    %140 = vector.extract_strided_slice %137 {offsets = [0, 64], sizes = [2, 32], strides = [1, 1]} : vector<2x128xf32> to vector<2x32xf32>
    %141 = vector.extract_strided_slice %137 {offsets = [0, 96], sizes = [2, 32], strides = [1, 1]} : vector<2x128xf32> to vector<2x32xf32>
    %142 = arith.mulf %139, %121 : vector<2x32xf32>
    %143 = arith.mulf %138, %140 : vector<2x32xf32>
    %144 = arith.addf %142, %143 : vector<2x32xf32>
    %145 = math.tanh %144 : vector<2x32xf32>
    %146 = arith.mulf %141, %145 : vector<2x32xf32>
    %c5 = arith.constant 5 : index
    %c0_36 = arith.constant 0 : index
    %c0_37 = arith.constant 0 : index
    %147 = vector.load %arg4[%c5, %c0_36, %c0_37] : memref<8x32x128xf32, #tpu.memory_space<vmem>>, vector<1x32x128xf32>
    %148 = vector.shape_cast %147 : vector<1x32x128xf32> to vector<32x128xf32>
    %cst_38 = arith.constant dense<0.000000e+00> : vector<2x128xf32>
    %149 = tpu.matmul %146, %148, %cst_38 {dimension_numbers = #tpu.dot_dimension_numbers<[1], [0], [0], [1], [0, 0, 1, 1], [], []>} : vector<2x32xf32>, vector<32x128xf32>, vector<2x128xf32> -> vector<2x128xf32>
    %150 = arith.addf %127, %149 : vector<2x128xf32>
    %151 = vector.extract_strided_slice %6 {offsets = [12, 0], sizes = [2, 128], strides = [1, 1]} : vector<16x128xf32> to vector<2x128xf32>
    %cst_39 = arith.constant dense<0.000000e+00> : vector<2x128xf32>
    %152 = tpu.matmul %146, %0, %cst_39 {dimension_numbers = #tpu.dot_dimension_numbers<[1], [0], [0], [1], [0, 0, 1, 1], [], []>} : vector<2x32xf32>, vector<32x128xf32>, vector<2x128xf32> -> vector<2x128xf32>
    %153 = arith.addf %151, %152 : vector<2x128xf32>
    %154 = math.tanh %153 : vector<2x128xf32>
    %155 = arith.negf %153 : vector<2x128xf32>
    %156 = math.exp %155 : vector<2x128xf32>
    %cst_40 = arith.constant 1.000000e+00 : f32
    %157 = vector.broadcast %cst_40 : f32 to vector<2x128xf32>
    %158 = arith.addf %157, %156 : vector<2x128xf32>
    %159 = arith.divf %157, %158 : vector<2x128xf32>
    %160 = arith.select %12, %154, %159 : vector<2x128xi1>, vector<2x128xf32>
    %161 = vector.extract_strided_slice %160 {offsets = [0, 0], sizes = [2, 32], strides = [1, 1]} : vector<2x128xf32> to vector<2x32xf32>
    %162 = vector.extract_strided_slice %160 {offsets = [0, 32], sizes = [2, 32], strides = [1, 1]} : vector<2x128xf32> to vector<2x32xf32>
    %163 = vector.extract_strided_slice %160 {offsets = [0, 64], sizes = [2, 32], strides = [1, 1]} : vector<2x128xf32> to vector<2x32xf32>
    %164 = vector.extract_strided_slice %160 {offsets = [0, 96], sizes = [2, 32], strides = [1, 1]} : vector<2x128xf32> to vector<2x32xf32>
    %165 = arith.mulf %162, %144 : vector<2x32xf32>
    %166 = arith.mulf %161, %163 : vector<2x32xf32>
    %167 = arith.addf %165, %166 : vector<2x32xf32>
    %168 = math.tanh %167 : vector<2x32xf32>
    %169 = arith.mulf %164, %168 : vector<2x32xf32>
    %c6 = arith.constant 6 : index
    %c0_41 = arith.constant 0 : index
    %c0_42 = arith.constant 0 : index
    %170 = vector.load %arg4[%c6, %c0_41, %c0_42] : memref<8x32x128xf32, #tpu.memory_space<vmem>>, vector<1x32x128xf32>
    %171 = vector.shape_cast %170 : vector<1x32x128xf32> to vector<32x128xf32>
    %cst_43 = arith.constant dense<0.000000e+00> : vector<2x128xf32>
    %172 = tpu.matmul %169, %171, %cst_43 {dimension_numbers = #tpu.dot_dimension_numbers<[1], [0], [0], [1], [0, 0, 1, 1], [], []>} : vector<2x32xf32>, vector<32x128xf32>, vector<2x128xf32> -> vector<2x128xf32>
    %173 = arith.addf %150, %172 : vector<2x128xf32>
    %174 = vector.extract_strided_slice %6 {offsets = [14, 0], sizes = [2, 128], strides = [1, 1]} : vector<16x128xf32> to vector<2x128xf32>
    %cst_44 = arith.constant dense<0.000000e+00> : vector<2x128xf32>
    %175 = tpu.matmul %169, %0, %cst_44 {dimension_numbers = #tpu.dot_dimension_numbers<[1], [0], [0], [1], [0, 0, 1, 1], [], []>} : vector<2x32xf32>, vector<32x128xf32>, vector<2x128xf32> -> vector<2x128xf32>
    %176 = arith.addf %174, %175 : vector<2x128xf32>
    %177 = math.tanh %176 : vector<2x128xf32>
    %178 = arith.negf %176 : vector<2x128xf32>
    %179 = math.exp %178 : vector<2x128xf32>
    %cst_45 = arith.constant 1.000000e+00 : f32
    %180 = vector.broadcast %cst_45 : f32 to vector<2x128xf32>
    %181 = arith.addf %180, %179 : vector<2x128xf32>
    %182 = arith.divf %180, %181 : vector<2x128xf32>
    %183 = arith.select %12, %177, %182 : vector<2x128xi1>, vector<2x128xf32>
    %184 = vector.extract_strided_slice %183 {offsets = [0, 0], sizes = [2, 32], strides = [1, 1]} : vector<2x128xf32> to vector<2x32xf32>
    %185 = vector.extract_strided_slice %183 {offsets = [0, 32], sizes = [2, 32], strides = [1, 1]} : vector<2x128xf32> to vector<2x32xf32>
    %186 = vector.extract_strided_slice %183 {offsets = [0, 64], sizes = [2, 32], strides = [1, 1]} : vector<2x128xf32> to vector<2x32xf32>
    %187 = vector.extract_strided_slice %183 {offsets = [0, 96], sizes = [2, 32], strides = [1, 1]} : vector<2x128xf32> to vector<2x32xf32>
    %188 = arith.mulf %185, %167 : vector<2x32xf32>
    %189 = arith.mulf %184, %186 : vector<2x32xf32>
    %190 = arith.addf %188, %189 : vector<2x32xf32>
    %191 = math.tanh %190 : vector<2x32xf32>
    %192 = arith.mulf %187, %191 : vector<2x32xf32>
    %c7 = arith.constant 7 : index
    %c0_46 = arith.constant 0 : index
    %c0_47 = arith.constant 0 : index
    %193 = vector.load %arg4[%c7, %c0_46, %c0_47] : memref<8x32x128xf32, #tpu.memory_space<vmem>>, vector<1x32x128xf32>
    %194 = vector.shape_cast %193 : vector<1x32x128xf32> to vector<32x128xf32>
    %cst_48 = arith.constant dense<0.000000e+00> : vector<2x128xf32>
    %195 = tpu.matmul %192, %194, %cst_48 {dimension_numbers = #tpu.dot_dimension_numbers<[1], [0], [0], [1], [0, 0, 1, 1], [], []>} : vector<2x32xf32>, vector<32x128xf32>, vector<2x128xf32> -> vector<2x128xf32>
    %196 = arith.addf %173, %195 : vector<2x128xf32>
    %c0_49 = arith.constant 0 : index
    %c0_50 = arith.constant 0 : index
    %197 = vector.load %arg5[%c0_49, %c0_50] : memref<1x128xf32, #tpu.memory_space<vmem>>, vector<1x128xf32>
    %198 = vector.broadcast %197 : vector<1x128xf32> to vector<2x128xf32>
    %199 = arith.addf %196, %198 : vector<2x128xf32>
    %c0_51 = arith.constant 0 : index
    %c0_52 = arith.constant 0 : index
    %200 = vector.load %arg6[%c0_51, %c0_52] : memref<2x128xf32, #tpu.memory_space<vmem>>, vector<2x128xf32>
    tpu.vector_store %arg6[%c0_51, %c0_52], %199 {strides = array<i32>} : memref<2x128xf32, #tpu.memory_space<vmem>>, vector<2x128xf32>,
    return
  }
}

</mosaic_0001>

<llo_original>
// kernel: seq2seq4_forward.1
$region0: #{seq2seq4_forward.1}
  #allocation0 [shape = 'u32[]', space=smem, size = 0x4, offset = 0x4, fixed_abs, tag = 'smem constant byte address 0x4 - core index']
  #allocation1 [shape = 'u32[144,128]{1,0:T(1,128)}', space=vmem, size = 0x12000, scoped, tag = 'internal scratch']
  %s0 = inlined_call_operand.vmem [shape: f32[16,16], index: 0, kind: input, shape index: {}]
  %s1 = inlined_call_operand.hbm [shape: f32[16,128], index: 1, kind: input, shape index: {}]
  %s2 = inlined_call_operand.vmem [shape: f32[32,128], index: 2, kind: input, shape index: {}]
  %s3 = inlined_call_operand.vmem [shape: f32[1,128], index: 3, kind: input, shape index: {}]
  %s4 = inlined_call_operand.hbm [shape: f32[8,32,128], index: 4, kind: input, shape index: {}]
  %s5 = inlined_call_operand.vmem [shape: f32[1,128], index: 5, kind: input, shape index: {}]
  %s6 = inlined_call_operand.vmem [shape: f32[2,128], index: 6, kind: output, shape index: {}]
  %s7 = sld [smem:[#allocation0]]
  $region42: #{seq2seq4_forward.1} parent=0
    _
  %s9 = ssub.s32 1, %s7
  %s10 = scalar_select 0, %s9, %s7
  $region1: #{seq2seq4_forward.1} parent=0
    #allocation2 [shape = 'u8[8192]{0}', space=vmem, size = 0x2000, scoped, tag = 'input window, operand 1, single buffered']
    #allocation3 [shape = 's32[1]{0}', space=sflag, size = 0x4, scoped, tag = 'scoped memory for seq2seq4_forward.1']
    #allocation4 [shape = 'u8[131072]{0}', space=vmem, size = 0x20000, scoped, tag = 'input window, operand 4, single buffered']
    #allocation5 [shape = 's32[1]{0}', space=sflag, size = 0x4, scoped, tag = 'scoped memory for seq2seq4_forward.1']
    %11 = vsyncpa [#allocation3], 0
    %12 = vsyncpa [#allocation5], 0
    // Predicated region
    $region2: #{seq2seq4_forward.1} parent=1 // pred_check
      _
    $region3: #{seq2seq4_forward.1} parent=1 // pred_check_branch
      %14 = sbr.rel (0) target = $region5
    $region4: #{seq2seq4_forward.1} parent=1 // pred_region
      _
    $region5: #{seq2seq4_forward.1} parent=1 // pred_fallthru
      _
    // Predicated region
    $region6: #{seq2seq4_forward.1} parent=1 // pred_check
      _
    $region7: #{seq2seq4_forward.1} parent=1 // pred_check_branch
      %16 = sbr.rel (0) target = $region9
    $region8: #{seq2seq4_forward.1} parent=1 // pred_region
      %s18 = ssub.s32 256, 256
      %19 = vsyncadd [#allocation3], %s18
      %s20 = sshll.u32 [#allocation2], 4
      %s21 = int_to_ptr.vmem [resolvable:$true] %s20
      %26 = dma.hbm_to_vmem [thread:$0]  %s1, 256, %s21, [#allocation3], 128, 128, 8
    $region9: #{seq2seq4_forward.1} parent=1 // pred_fallthru
      _
    // Predicated region
    $region10: #{seq2seq4_forward.1} parent=1 // pred_check
      _
    $region11: #{seq2seq4_forward.1} parent=1 // pred_check_branch
      %28 = sbr.rel (0) target = $region13
    $region12: #{seq2seq4_forward.1} parent=1 // pred_region
      _
    $region13: #{seq2seq4_forward.1} parent=1 // pred_fallthru
      _
    // Predicated region
    $region14: #{seq2seq4_forward.1} parent=1 // pred_check
      _
    $region15: #{seq2seq4_forward.1} parent=1 // pred_check_branch
      %30 = sbr.rel (0) target = $region17
    $region16: #{seq2seq4_forward.1} parent=1 // pred_region
      _
    $region17: #{seq2seq4_forward.1} parent=1 // pred_fallthru
      _
    // Predicated region
    $region18: #{seq2seq4_forward.1} parent=1 // pred_check
      _
    $region19: #{seq2seq4_forward.1} parent=1 // pred_check_branch
      %32 = sbr.rel (0) target = $region21
    $region20: #{seq2seq4_forward.1} parent=1 // pred_region
      %s34 = ssub.s32 4096, 4096
      %35 = vsyncadd [#allocation5], %s34
      %s36 = sshll.u32 [#allocation4], 4
      %s37 = int_to_ptr.vmem [resolvable:$true] %s36
      %42 = dma.hbm_to_vmem [thread:$0]  %s4, 4096, %s37, [#allocation5], 128, 128, 8
    $region21: #{seq2seq4_forward.1} parent=1 // pred_fallthru
      _
    // Predicated region
    $region22: #{seq2seq4_forward.1} parent=1 // pred_check
      _
    $region23: #{seq2seq4_forward.1} parent=1 // pred_check_branch
      %44 = sbr.rel (0) target = $region25
    $region24: #{seq2seq4_forward.1} parent=1 // pred_region
      _
    $region25: #{seq2seq4_forward.1} parent=1 // pred_fallthru
      _
    // Predicated region
    $region26: #{seq2seq4_forward.1} parent=1 // pred_check
      _
    $region27: #{seq2seq4_forward.1} parent=1 // pred_check_branch
      %46 = sbr.rel (0) target = $region29
    $region28: #{seq2seq4_forward.1} parent=1 // pred_region
      %47 = dma.done [#allocation3], 256
    $region29: #{seq2seq4_forward.1} parent=1 // pred_fallthru
      _
    // Predicated region
    $region30: #{seq2seq4_forward.1} parent=1 // pred_check
      _
    $region31: #{seq2seq4_forward.1} parent=1 // pred_check_branch
      %49 = sbr.rel (0) target = $region33
    $region32: #{seq2seq4_forward.1} parent=1 // pred_region
      %50 = dma.done [#allocation5], 4096
    $region33: #{seq2seq4_forward.1} parent=1 // pred_fallthru
      _
    %v51 = vld [vmem:[%s2] sm:$0xff]
    %v52 = vld [vmem:[%s2 + $0x8] sm:$0xff]
    %v53 = vld [vmem:[%s2 + $0x10] sm:$0xff]
    %v54 = vld [vmem:[%s2 + $0x18] sm:$0xff]
    %v55 = vld [vmem:[%s0] sm:$0xff]
    %v56 = vld [vmem:[%s0 + $0x8] sm:$0xff]
    %v57 = vld [vmem:[#allocation2] sm:$0xff]
    %v58 = vld [vmem:[#allocation2 + $0x8] sm:$0xff]
    %v59 = vld [vmem:[%s3] sm:$0x1]
    %v61 = vlaneseq
    %v62 = vshrl.u32 %v61, 7
    %v63 = vsub.s32 0, %v62
    %v64 = vrot.slane %v59, %v63
    %vm66 = vcmask 130048
    %v68 = vsel %vm66, %v55, 0
    %v71 = vsel %vm66, %v56, 0
    %73 = vmatprep.subr.mxu0 0.0
    %74 = vmatpush1.msra.mxu0 %v57
    %75 = vmatprep.subr.mxu0 0.0
    %76 = vmatpush1.msra.mxu0 %v58
    %77 = vmatprep.subr.mxu0 0.0
    %78 = vmatpush1.msra.mxu0 0.0
    %79 = vmatprep.subr.mxu0 0.0
    %80 = vmatpush1.msra.mxu0 0.0
    %81 = vmatprep.subr.mxu0 0.0
    %82 = vmatpush1.msra.mxu0 0.0
    %83 = vmatprep.subr.mxu0 0.0
    %84 = vmatpush1.msra.mxu0 0.0
    %85 = vmatprep.subr.mxu0 0.0
    %86 = vmatpush1.msra.mxu0 0.0
    %87 = vmatprep.subr.mxu0 0.0
    %88 = vmatpush1.msra.mxu0 0.0
    %89 = vmatprep.subr.mxu0 0.0
    %90 = vmatpush1.msra.mxu0 0.0
    %91 = vmatprep.subr.mxu0 0.0
    %92 = vmatpush1.msra.mxu0 0.0
    %93 = vmatprep.subr.mxu0 0.0
    %94 = vmatpush1.msra.mxu0 0.0
    %95 = vmatprep.subr.mxu0 0.0
    %96 = vmatpush1.msra.mxu0 0.0
    %97 = vmatprep.subr.mxu0 0.0
    %98 = vmatpush1.msra.mxu0 0.0
    %99 = vmatprep.subr.mxu0 0.0
    %100 = vmatpush1.msra.mxu0 0.0
    %101 = vmatprep.subr.mxu0 0.0
    %102 = vmatpush1.msra.mxu0 0.0
    %103 = vmatprep.subr.mxu0 0.0
    %104 = vmatpush1.msra.mxu0 0.0
    %105 = vmatprep.subr.mxu0 0.0
    %106 = vmatpush1.msra.mxu0 0.0
    %107 = vmatprep.subr.mxu0 0.0
    %108 = vmatpush1.msra.mxu0 0.0
    %109 = vmatprep.subr.mxu0 0.0
    %110 = vmatpush1.msra.mxu0 0.0
    %111 = vmatprep.subr.mxu0 0.0
    %112 = vmatpush1.msra.mxu0 0.0
    %113 = vmatprep.subr.mxu0 0.0
    %114 = vmatpush1.msra.mxu0 0.0
    %115 = vmatprep.subr.mxu0 0.0
    %116 = vmatpush1.msra.mxu0 0.0
    %117 = vmatprep.subr.mxu0 0.0
    %118 = vmatpush1.msra.mxu0 0.0
    %119 = vmatprep.subr.mxu0 0.0
    %120 = vmatpush1.msra.mxu0 0.0
    %121 = vmatprep.subr.mxu0 0.0
    %122 = vmatpush1.msra.mxu0 0.0
    %123 = vmatprep.subr.mxu0 0.0
    %124 = vmatpush1.msra.mxu0 0.0
    %125 = vmatprep.subr.mxu0 0.0
    %126 = vmatpush1.msra.mxu0 0.0
    %127 = vmatprep.subr.mxu0 0.0
    %128 = vmatpush1.msra.mxu0 0.0
    %129 = vmatprep.subr.mxu0 0.0
    %130 = vmatpush1.msra.mxu0 0.0
    %131 = vmatprep.subr.mxu0 0.0
    %132 = vmatpush1.msra.mxu0 0.0
    %133 = vmatprep.subr.mxu0 0.0
    %134 = vmatpush1.msra.mxu0 0.0
    %135 = vmatprep.subr.mxu0 0.0
    %136 = vmatpush1.msra.mxu0 0.0
    %137 = vmatprep.mubr.f32.mxu0 0.0
    %138 = vmatmul.mubr.f32.gmra.mrb[0].mxu0 %v68
    %v139 = vpop.f32.mrb[0].mxu0
    %v140 = vadd.f32 %v64, %v139
    %v141 = vpop.f32.mrb[0].mxu0
    %142 = vmatprep.mubr.f32.mxu0 0.0
    %143 = vmatmul.mubr.f32.gmra.mrb[0].mxu0 %v71
    %v144 = vpop.f32.mrb[0].mxu0
    %v145 = vadd.f32 %v64, %v144
    %v146 = vpop.f32.mrb[0].mxu0
    %147 = vdwg.mxu0
    %v148 = vlaneseq
    %v149 = vand.u32 %v148, 127
    %vm150 = vcmp.ge.s32.totalorder %v149, 64
    %vm151 = vcmp.lt.s32.totalorder %v149, 96
    %vm152 = vmand %vm150, %vm151
    %v153 = vtanh.pop %v140
    %v154 = vxor.u32 %v140, 2147483648
    %v155 = vmul.f32 %v154, 1.442695
    %v156 = vpow.pop %v155
    %v157 = vadd.f32 %v156, 1.0
    %v158 = vrcp.pop %v157
    %v159 = vmul.f32 1.0, %v158
    %v160 = vsel %vm152, %v153, %v159
    %v161 = vmul.f32 %v160, 0.0
    %163 = vrot.lane.b32.xlu0 %v160, 64
    %v164 = vpop.permute.xlu0 %163
    %v166 = vmul.f32 %v160, %v164
    %168 = vrot.lane.b32.xlu0 %v166, 32
    %v169 = vpop.permute.xlu0 %168
    %v171 = vadd.f32 %v161, %v169
    %v172 = vtanh.pop %v171
    %174 = vrot.lane.b32.xlu0 %v172, 64
    %v175 = vpop.permute.xlu0 %174
    %v177 = vmul.f32 %v160, %v175
    %v178 = vld [vmem:[#allocation4] sm:$0xff]
    %v179 = vld [vmem:[#allocation4 + $0x8] sm:$0xff]
    %v180 = vld [vmem:[#allocation4 + $0x10] sm:$0xff]
    %v181 = vld [vmem:[#allocation4 + $0x18] sm:$0xff]
    %183 = vrot.lane.b32.xlu0 %v177, 32
    %v184 = vpop.permute.xlu0 %183
    %vm185 = vcmask 261120
    %v186 = vsel %vm185, %v184, 0
    %188 = vmatprep.subr.mxu0 0.0
    %189 = vmatpush1.msra.mxu0 %v51
    %190 = vmatprep.subr.mxu0 0.0
    %191 = vmatpush1.msra.mxu0 %v52
    %192 = vmatprep.subr.mxu0 0.0
    %193 = vmatpush1.msra.mxu0 %v53
    %194 = vmatprep.subr.mxu0 0.0
    %195 = vmatpush1.msra.mxu0 %v54
    %196 = vmatprep.subr.mxu0 0.0
    %197 = vmatpush1.msra.mxu0 0.0
    %198 = vmatprep.subr.mxu0 0.0
    %199 = vmatpush1.msra.mxu0 0.0
    %200 = vmatprep.subr.mxu0 0.0
    %201 = vmatpush1.msra.mxu0 0.0
    %202 = vmatprep.subr.mxu0 0.0
    %203 = vmatpush1.msra.mxu0 0.0
    %204 = vmatprep.subr.mxu0 0.0
    %205 = vmatpush1.msra.mxu0 0.0
    %206 = vmatprep.subr.mxu0 0.0
    %207 = vmatpush1.msra.mxu0 0.0
    %208 = vmatprep.subr.mxu0 0.0
    %209 = vmatpush1.msra.mxu0 0.0
    %210 = vmatprep.subr.mxu0 0.0
    %211 = vmatpush1.msra.mxu0 0.0
    %212 = vmatprep.subr.mxu0 0.0
    %213 = vmatpush1.msra.mxu0 0.0
    %214 = vmatprep.subr.mxu0 0.0
    %215 = vmatpush1.msra.mxu0 0.0
    %216 = vmatprep.subr.mxu0 0.0
    %217 = vmatpush1.msra.mxu0 0.0
    %218 = vmatprep.subr.mxu0 0.0
    %219 = vmatpush1.msra.mxu0 0.0
    %220 = vmatprep.subr.mxu0 0.0
    %221 = vmatpush1.msra.mxu0 0.0
    %222 = vmatprep.subr.mxu0 0.0
    %223 = vmatpush1.msra.mxu0 0.0
    %224 = vmatprep.subr.mxu0 0.0
    %225 = vmatpush1.msra.mxu0 0.0
    %226 = vmatprep.subr.mxu0 0.0
    %227 = vmatpush1.msra.mxu0 0.0
    %228 = vmatprep.subr.mxu0 0.0
    %229 = vmatpush1.msra.mxu0 0.0
    %230 = vmatprep.subr.mxu0 0.0
    %231 = vmatpush1.msra.mxu0 0.0
    %232 = vmatprep.subr.mxu0 0.0
    %233 = vmatpush1.msra.mxu0 0.0
    %234 = vmatprep.subr.mxu0 0.0
    %235 = vmatpush1.msra.mxu0 0.0
    %236 = vmatprep.subr.mxu0 0.0
    %237 = vmatpush1.msra.mxu0 0.0
    %238 = vmatprep.subr.mxu0 0.0
    %239 = vmatpush1.msra.mxu0 0.0
    %240 = vmatprep.subr.mxu0 0.0
    %241 = vmatpush1.msra.mxu0 0.0
    %242 = vmatprep.subr.mxu0 0.0
    %243 = vmatpush1.msra.mxu0 0.0
    %244 = vmatprep.subr.mxu0 0.0
    %245 = vmatpush1.msra.mxu0 0.0
    %246 = vmatprep.subr.mxu0 0.0
    %247 = vmatpush1.msra.mxu0 0.0
    %248 = vmatprep.subr.mxu0 0.0
    %249 = vmatpush1.msra.mxu0 0.0
    %250 = vmatprep.subr.mxu0 0.0
    %251 = vmatpush1.msra.mxu0 0.0
    %252 = vmatprep.mubr.f32.mxu0 0.0
    %253 = vmatmul.mubr.f32.gmra.mrb[0].mxu0 %v186
    %v254 = vpop.f32.mrb[0].mxu0
    %v255 = vadd.f32 0.0, %v254
    %v256 = vpop.f32.mrb[0].mxu0
    %257 = vdwg.mxu0
    %v259 = vrot.slane %v255, 6
    %v261 = vadd.f32 %v140, %v259
    %v262 = vtanh.pop %v261
    %v263 = vxor.u32 %v261, 2147483648
    %v264 = vmul.f32 %v263, 1.442695
    %v265 = vpow.pop %v264
    %v266 = vadd.f32 %v265, 1.0
    %v267 = vrcp.pop %v266
    %v268 = vmul.f32 1.0, %v267
    %v269 = vsel %vm152, %v262, %v268
    %v271 = vrot.slane %v171, 6
    %v273 = vmul.f32 %v269, %v271
    %275 = vrot.lane.b32.xlu0 %v269, 64
    %v276 = vpop.permute.xlu0 %275
    %v278 = vmul.f32 %v269, %v276
    %280 = vrot.lane.b32.xlu0 %v278, 32
    %v281 = vpop.permute.xlu0 %280
    %v283 = vadd.f32 %v273, %v281
    %v284 = vtanh.pop %v283
    %286 = vrot.lane.b32.xlu0 %v284, 64
    %v287 = vpop.permute.xlu0 %286
    %v289 = vmul.f32 %v269, %v287
    %s290 = scalar_lea.vmem [#allocation4], 32
    %v291 = vld [vmem:[%s290] sm:$0xff]
    %v292 = vld [vmem:[%s290 + $0x8] sm:$0xff]
    %v293 = vld [vmem:[%s290 + $0x10] sm:$0xff]
    %v294 = vld [vmem:[%s290 + $0x18] sm:$0xff]
    %v296 = vrot.slane %v289, 2
    %297 = vrot.lane.b32.xlu0 %v296, 32
    %v298 = vpop.permute.xlu0 %297
    %v299 = vsel %vm185, %v298, 0
    %301 = vmatprep.subr.mxu0 0.0
    %302 = vmatpush1.msra.mxu0 %v291
    %303 = vmatprep.subr.mxu0 0.0
    %304 = vmatpush1.msra.mxu0 %v292
    %305 = vmatprep.subr.mxu0 0.0
    %306 = vmatpush1.msra.mxu0 %v293
    %307 = vmatprep.subr.mxu0 0.0
    %308 = vmatpush1.msra.mxu0 %v294
    %309 = vmatprep.subr.mxu0 0.0
    %310 = vmatpush1.msra.mxu0 0.0
    %311 = vmatprep.subr.mxu0 0.0
    %312 = vmatpush1.msra.mxu0 0.0
    %313 = vmatprep.subr.mxu0 0.0
    %314 = vmatpush1.msra.mxu0 0.0
    %315 = vmatprep.subr.mxu0 0.0
    %316 = vmatpush1.msra.mxu0 0.0
    %317 = vmatprep.subr.mxu0 0.0
    %318 = vmatpush1.msra.mxu0 0.0
    %319 = vmatprep.subr.mxu0 0.0
    %320 = vmatpush1.msra.mxu0 0.0
    %321 = vmatprep.subr.mxu0 0.0
    %322 = vmatpush1.msra.mxu0 0.0
    %323 = vmatprep.subr.mxu0 0.0
    %324 = vmatpush1.msra.mxu0 0.0
    %325 = vmatprep.subr.mxu0 0.0
    %326 = vmatpush1.msra.mxu0 0.0
    %327 = vmatprep.subr.mxu0 0.0
    %328 = vmatpush1.msra.mxu0 0.0
    %329 = vmatprep.subr.mxu0 0.0
    %330 = vmatpush1.msra.mxu0 0.0
    %331 = vmatprep.subr.mxu0 0.0
    %332 = vmatpush1.msra.mxu0 0.0
    %333 = vmatprep.subr.mxu0 0.0
    %334 = vmatpush1.msra.mxu0 0.0
    %335 = vmatprep.subr.mxu0 0.0
    %336 = vmatpush1.msra.mxu0 0.0
    %337 = vmatprep.subr.mxu0 0.0
    %338 = vmatpush1.msra.mxu0 0.0
    %339 = vmatprep.subr.mxu0 0.0
    %340 = vmatpush1.msra.mxu0 0.0
    %341 = vmatprep.subr.mxu0 0.0
    %342 = vmatpush1.msra.mxu0 0.0
    %343 = vmatprep.subr.mxu0 0.0
    %344 = vmatpush1.msra.mxu0 0.0
    %345 = vmatprep.subr.mxu0 0.0
    %346 = vmatpush1.msra.mxu0 0.0
    %347 = vmatprep.subr.mxu0 0.0
    %348 = vmatpush1.msra.mxu0 0.0
    %349 = vmatprep.subr.mxu0 0.0
    %350 = vmatpush1.msra.mxu0 0.0
    %351 = vmatprep.subr.mxu0 0.0
    %352 = vmatpush1.msra.mxu0 0.0
    %353 = vmatprep.subr.mxu0 0.0
    %354 = vmatpush1.msra.mxu0 0.0
    %355 = vmatprep.subr.mxu0 0.0
    %356 = vmatpush1.msra.mxu0 0.0
    %357 = vmatprep.subr.mxu0 0.0
    %358 = vmatpush1.msra.mxu0 0.0
    %359 = vmatprep.subr.mxu0 0.0
    %360 = vmatpush1.msra.mxu0 0.0
    %361 = vmatprep.subr.mxu0 0.0
    %362 = vmatpush1.msra.mxu0 0.0
    %363 = vmatprep.subr.mxu0 0.0
    %364 = vmatpush1.msra.mxu0 0.0
    %365 = vmatprep.mubr.f32.mxu0 0.0
    %366 = vmatmul.mubr.f32.gmra.mrb[0].mxu0 %v299
    %v367 = vpop.f32.mrb[0].mxu0
    %v368 = vadd.f32 0.0, %v367
    %v369 = vpop.f32.mrb[0].mxu0
    %370 = vdwg.mxu0
    %371 = vmatprep.subr.mxu0 0.0
    %372 = vmatpush1.msra.mxu0 %v178
    %373 = vmatprep.subr.mxu0 0.0
    %374 = vmatpush1.msra.mxu0 %v179
    %375 = vmatprep.subr.mxu0 0.0
    %376 = vmatpush1.msra.mxu0 %v180
    %377 = vmatprep.subr.mxu0 0.0
    %378 = vmatpush1.msra.mxu0 %v181
    %379 = vmatprep.subr.mxu0 0.0
    %380 = vmatpush1.msra.mxu0 0.0
    %381 = vmatprep.subr.mxu0 0.0
    %382 = vmatpush1.msra.mxu0 0.0
    %383 = vmatprep.subr.mxu0 0.0
    %384 = vmatpush1.msra.mxu0 0.0
    %385 = vmatprep.subr.mxu0 0.0
    %386 = vmatpush1.msra.mxu0 0.0
    %387 = vmatprep.subr.mxu0 0.0
    %388 = vmatpush1.msra.mxu0 0.0
    %389 = vmatprep.subr.mxu0 0.0
    %390 = vmatpush1.msra.mxu0 0.0
    %391 = vmatprep.subr.mxu0 0.0
    %392 = vmatpush1.msra.mxu0 0.0
    %393 = vmatprep.subr.mxu0 0.0
    %394 = vmatpush1.msra.mxu0 0.0
    %395 = vmatprep.subr.mxu0 0.0
    %396 = vmatpush1.msra.mxu0 0.0
    %397 = vmatprep.subr.mxu0 0.0
    %398 = vmatpush1.msra.mxu0 0.0
    %399 = vmatprep.subr.mxu0 0.0
    %400 = vmatpush1.msra.mxu0 0.0
    %401 = vmatprep.subr.mxu0 0.0
    %402 = vmatpush1.msra.mxu0 0.0
    %403 = vmatprep.subr.mxu0 0.0
    %404 = vmatpush1.msra.mxu0 0.0
    %405 = vmatprep.subr.mxu0 0.0
    %406 = vmatpush1.msra.mxu0 0.0
    %407 = vmatprep.subr.mxu0 0.0
    %408 = vmatpush1.msra.mxu0 0.0
    %409 = vmatprep.subr.mxu0 0.0
    %410 = vmatpush1.msra.mxu0 0.0
    %411 = vmatprep.subr.mxu0 0.0
    %412 = vmatpush1.msra.mxu0 0.0
    %413 = vmatprep.subr.mxu0 0.0
    %414 = vmatpush1.msra.mxu0 0.0
    %415 = vmatprep.subr.mxu0 0.0
    %416 = vmatpush1.msra.mxu0 0.0
    %417 = vmatprep.subr.mxu0 0.0
    %418 = vmatpush1.msra.mxu0 0.0
    %419 = vmatprep.subr.mxu0 0.0
    %420 = vmatpush1.msra.mxu0 0.0
    %421 = vmatprep.subr.mxu0 0.0
    %422 = vmatpush1.msra.mxu0 0.0
    %423 = vmatprep.subr.mxu0 0.0
    %424 = vmatpush1.msra.mxu0 0.0
    %425 = vmatprep.subr.mxu0 0.0
    %426 = vmatpush1.msra.mxu0 0.0
    %427 = vmatprep.subr.mxu0 0.0
    %428 = vmatpush1.msra.mxu0 0.0
    %429 = vmatprep.subr.mxu0 0.0
    %430 = vmatpush1.msra.mxu0 0.0
    %431 = vmatprep.subr.mxu0 0.0
    %432 = vmatpush1.msra.mxu0 0.0
    %433 = vmatprep.subr.mxu0 0.0
    %434 = vmatpush1.msra.mxu0 0.0
    %435 = vmatprep.mubr.f32.mxu0 0.0
    %436 = vmatmul.mubr.f32.gmra.mrb[0].mxu0 %v186
    %v437 = vpop.f32.mrb[0].mxu0
    %v438 = vadd.f32 %v368, %v437
    %v439 = vpop.f32.mrb[0].mxu0
    %440 = vdwg.mxu0
    %441 = vmatprep.subr.mxu0 0.0
    %442 = vmatpush1.msra.mxu0 %v51
    %443 = vmatprep.subr.mxu0 0.0
    %444 = vmatpush1.msra.mxu0 %v52
    %445 = vmatprep.subr.mxu0 0.0
    %446 = vmatpush1.msra.mxu0 %v53
    %447 = vmatprep.subr.mxu0 0.0
    %448 = vmatpush1.msra.mxu0 %v54
    %449 = vmatprep.subr.mxu0 0.0
    %450 = vmatpush1.msra.mxu0 0.0
    %451 = vmatprep.subr.mxu0 0.0
    %452 = vmatpush1.msra.mxu0 0.0
    %453 = vmatprep.subr.mxu0 0.0
    %454 = vmatpush1.msra.mxu0 0.0
    %455 = vmatprep.subr.mxu0 0.0
    %456 = vmatpush1.msra.mxu0 0.0
    %457 = vmatprep.subr.mxu0 0.0
    %458 = vmatpush1.msra.mxu0 0.0
    %459 = vmatprep.subr.mxu0 0.0
    %460 = vmatpush1.msra.mxu0 0.0
    %461 = vmatprep.subr.mxu0 0.0
    %462 = vmatpush1.msra.mxu0 0.0
    %463 = vmatprep.subr.mxu0 0.0
    %464 = vmatpush1.msra.mxu0 0.0
    %465 = vmatprep.subr.mxu0 0.0
    %466 = vmatpush1.msra.mxu0 0.0
    %467 = vmatprep.subr.mxu0 0.0
    %468 = vmatpush1.msra.mxu0 0.0
    %469 = vmatprep.subr.mxu0 0.0
    %470 = vmatpush1.msra.mxu0 0.0
    %471 = vmatprep.subr.mxu0 0.0
    %472 = vmatpush1.msra.mxu0 0.0
    %473 = vmatprep.subr.mxu0 0.0
    %474 = vmatpush1.msra.mxu0 0.0
    %475 = vmatprep.subr.mxu0 0.0
    %476 = vmatpush1.msra.mxu0 0.0
    %477 = vmatprep.subr.mxu0 0.0
    %478 = vmatpush1.msra.mxu0 0.0
    %479 = vmatprep.subr.mxu0 0.0
    %480 = vmatpush1.msra.mxu0 0.0
    %481 = vmatprep.subr.mxu0 0.0
    %482 = vmatpush1.msra.mxu0 0.0
    %483 = vmatprep.subr.mxu0 0.0
    %484 = vmatpush1.msra.mxu0 0.0
    %485 = vmatprep.subr.mxu0 0.0
    %486 = vmatpush1.msra.mxu0 0.0
    %487 = vmatprep.subr.mxu0 0.0
    %488 = vmatpush1.msra.mxu0 0.0
    %489 = vmatprep.subr.mxu0 0.0
    %490 = vmatpush1.msra.mxu0 0.0
    %491 = vmatprep.subr.mxu0 0.0
    %492 = vmatpush1.msra.mxu0 0.0
    %493 = vmatprep.subr.mxu0 0.0
    %494 = vmatpush1.msra.mxu0 0.0
    %495 = vmatprep.subr.mxu0 0.0
    %496 = vmatpush1.msra.mxu0 0.0
    %497 = vmatprep.subr.mxu0 0.0
    %498 = vmatpush1.msra.mxu0 0.0
    %499 = vmatprep.subr.mxu0 0.0
    %500 = vmatpush1.msra.mxu0 0.0
    %501 = vmatprep.subr.mxu0 0.0
    %502 = vmatpush1.msra.mxu0 0.0
    %503 = vmatprep.subr.mxu0 0.0
    %504 = vmatpush1.msra.mxu0 0.0
    %505 = vmatprep.mubr.f32.mxu0 0.0
    %506 = vmatmul.mubr.f32.gmra.mrb[0].mxu0 %v299
    %v507 = vpop.f32.mrb[0].mxu0
    %v508 = vadd.f32 0.0, %v507
    %v509 = vpop.f32.mrb[0].mxu0
    %510 = vdwg.mxu0
    %v512 = vrot.slane %v508, 4
    %v514 = vadd.f32 %v140, %v512
    %v515 = vtanh.pop %v514
    %v516 = vxor.u32 %v514, 2147483648
    %v517 = vmul.f32 %v516, 1.442695
    %v518 = vpow.pop %v517
    %v519 = vadd.f32 %v518, 1.0
    %v520 = vrcp.pop %v519
    %v521 = vmul.f32 1.0, %v520
    %v522 = vsel %vm152, %v515, %v521
    %v524 = vrot.slane %v283, 6
    %v526 = vmul.f32 %v522, %v524
    %528 = vrot.lane.b32.xlu0 %v522, 64
    %v529 = vpop.permute.xlu0 %528
    %v531 = vmul.f32 %v522, %v529
    %533 = vrot.lane.b32.xlu0 %v531, 32
    %v534 = vpop.permute.xlu0 %533
    %v536 = vadd.f32 %v526, %v534
    %v537 = vtanh.pop %v536
    %539 = vrot.lane.b32.xlu0 %v537, 64
    %v540 = vpop.permute.xlu0 %539
    %v542 = vmul.f32 %v522, %v540
    %s543 = scalar_lea.vmem [#allocation4], 64
    %v544 = vld [vmem:[%s543] sm:$0xff]
    %v545 = vld [vmem:[%s543 + $0x8] sm:$0xff]
    %v546 = vld [vmem:[%s543 + $0x10] sm:$0xff]
    %v547 = vld [vmem:[%s543 + $0x18] sm:$0xff]
    %v549 = vrot.slane %v542, 4
    %550 = vrot.lane.b32.xlu0 %v549, 32
    %v551 = vpop.permute.xlu0 %550
    %v552 = vsel %vm185, %v551, 0
    %554 = vmatprep.subr.mxu0 0.0
    %555 = vmatpush1.msra.mxu0 %v544
    %556 = vmatprep.subr.mxu0 0.0
    %557 = vmatpush1.msra.mxu0 %v545
    %558 = vmatprep.subr.mxu0 0.0
    %559 = vmatpush1.msra.mxu0 %v546
    %560 = vmatprep.subr.mxu0 0.0
    %561 = vmatpush1.msra.mxu0 %v547
    %562 = vmatprep.subr.mxu0 0.0
    %563 = vmatpush1.msra.mxu0 0.0
    %564 = vmatprep.subr.mxu0 0.0
    %565 = vmatpush1.msra.mxu0 0.0
    %566 = vmatprep.subr.mxu0 0.0
    %567 = vmatpush1.msra.mxu0 0.0
    %568 = vmatprep.subr.mxu0 0.0
    %569 = vmatpush1.msra.mxu0 0.0
    %570 = vmatprep.subr.mxu0 0.0
    %571 = vmatpush1.msra.mxu0 0.0
    %572 = vmatprep.subr.mxu0 0.0
    %573 = vmatpush1.msra.mxu0 0.0
    %574 = vmatprep.subr.mxu0 0.0
    %575 = vmatpush1.msra.mxu0 0.0
    %576 = vmatprep.subr.mxu0 0.0
    %577 = vmatpush1.msra.mxu0 0.0
    %578 = vmatprep.subr.mxu0 0.0
    %579 = vmatpush1.msra.mxu0 0.0
    %580 = vmatprep.subr.mxu0 0.0
    %581 = vmatpush1.msra.mxu0 0.0
    %582 = vmatprep.subr.mxu0 0.0
    %583 = vmatpush1.msra.mxu0 0.0
    %584 = vmatprep.subr.mxu0 0.0
    %585 = vmatpush1.msra.mxu0 0.0
    %586 = vmatprep.subr.mxu0 0.0
    %587 = vmatpush1.msra.mxu0 0.0
    %588 = vmatprep.subr.mxu0 0.0
    %589 = vmatpush1.msra.mxu0 0.0
    %590 = vmatprep.subr.mxu0 0.0
    %591 = vmatpush1.msra.mxu0 0.0
    %592 = vmatprep.subr.mxu0 0.0
    %593 = vmatpush1.msra.mxu0 0.0
    %594 = vmatprep.subr.mxu0 0.0
    %595 = vmatpush1.msra.mxu0 0.0
    %596 = vmatprep.subr.mxu0 0.0
    %597 = vmatpush1.msra.mxu0 0.0
    %598 = vmatprep.subr.mxu0 0.0
    %599 = vmatpush1.msra.mxu0 0.0
    %600 = vmatprep.subr.mxu0 0.0
    %601 = vmatpush1.msra.mxu0 0.0
    %602 = vmatprep.subr.mxu0 0.0
    %603 = vmatpush1.msra.mxu0 0.0
    %604 = vmatprep.subr.mxu0 0.0
    %605 = vmatpush1.msra.mxu0 0.0
    %606 = vmatprep.subr.mxu0 0.0
    %607 = vmatpush1.msra.mxu0 0.0
    %608 = vmatprep.subr.mxu0 0.0
    %609 = vmatpush1.msra.mxu0 0.0
    %610 = vmatprep.subr.mxu0 0.0
    %611 = vmatpush1.msra.mxu0 0.0
    %612 = vmatprep.subr.mxu0 0.0
    %613 = vmatpush1.msra.mxu0 0.0
    %614 = vmatprep.subr.mxu0 0.0
    %615 = vmatpush1.msra.mxu0 0.0
    %616 = vmatprep.subr.mxu0 0.0
    %617 = vmatpush1.msra.mxu0 0.0
    %618 = vmatprep.mubr.f32.mxu0 0.0
    %619 = vmatmul.mubr.f32.gmra.mrb[0].mxu0 %v552
    %v620 = vpop.f32.mrb[0].mxu0
    %v621 = vadd.f32 0.0, %v620
    %v622 = vpop.f32.mrb[0].mxu0
    %623 = vdwg.mxu0
    %v624 = vadd.f32 %v438, %v621
    %625 = vmatprep.subr.mxu0 0.0
    %626 = vmatpush1.msra.mxu0 %v51
    %627 = vmatprep.subr.mxu0 0.0
    %628 = vmatpush1.msra.mxu0 %v52
    %629 = vmatprep.subr.mxu0 0.0
    %630 = vmatpush1.msra.mxu0 %v53
    %631 = vmatprep.subr.mxu0 0.0
    %632 = vmatpush1.msra.mxu0 %v54
    %633 = vmatprep.subr.mxu0 0.0
    %634 = vmatpush1.msra.mxu0 0.0
    %635 = vmatprep.subr.mxu0 0.0
    %636 = vmatpush1.msra.mxu0 0.0
    %637 = vmatprep.subr.mxu0 0.0
    %638 = vmatpush1.msra.mxu0 0.0
    %639 = vmatprep.subr.mxu0 0.0
    %640 = vmatpush1.msra.mxu0 0.0
    %641 = vmatprep.subr.mxu0 0.0
    %642 = vmatpush1.msra.mxu0 0.0
    %643 = vmatprep.subr.mxu0 0.0
    %644 = vmatpush1.msra.mxu0 0.0
    %645 = vmatprep.subr.mxu0 0.0
    %646 = vmatpush1.msra.mxu0 0.0
    %647 = vmatprep.subr.mxu0 0.0
    %648 = vmatpush1.msra.mxu0 0.0
    %649 = vmatprep.subr.mxu0 0.0
    %650 = vmatpush1.msra.mxu0 0.0
    %651 = vmatprep.subr.mxu0 0.0
    %652 = vmatpush1.msra.mxu0 0.0
    %653 = vmatprep.subr.mxu0 0.0
    %654 = vmatpush1.msra.mxu0 0.0
    %655 = vmatprep.subr.mxu0 0.0
    %656 = vmatpush1.msra.mxu0 0.0
    %657 = vmatprep.subr.mxu0 0.0
    %658 = vmatpush1.msra.mxu0 0.0
    %659 = vmatprep.subr.mxu0 0.0
    %660 = vmatpush1.msra.mxu0 0.0
    %661 = vmatprep.subr.mxu0 0.0
    %662 = vmatpush1.msra.mxu0 0.0
    %663 = vmatprep.subr.mxu0 0.0
    %664 = vmatpush1.msra.mxu0 0.0
    %665 = vmatprep.subr.mxu0 0.0
    %666 = vmatpush1.msra.mxu0 0.0
    %667 = vmatprep.subr.mxu0 0.0
    %668 = vmatpush1.msra.mxu0 0.0
    %669 = vmatprep.subr.mxu0 0.0
    %670 = vmatpush1.msra.mxu0 0.0
    %671 = vmatprep.subr.mxu0 0.0
    %672 = vmatpush1.msra.mxu0 0.0
    %673 = vmatprep.subr.mxu0 0.0
    %674 = vmatpush1.msra.mxu0 0.0
    %675 = vmatprep.subr.mxu0 0.0
    %676 = vmatpush1.msra.mxu0 0.0
    %677 = vmatprep.subr.mxu0 0.0
    %678 = vmatpush1.msra.mxu0 0.0
    %679 = vmatprep.subr.mxu0 0.0
    %680 = vmatpush1.msra.mxu0 0.0
    %681 = vmatprep.subr.mxu0 0.0
    %682 = vmatpush1.msra.mxu0 0.0
    %683 = vmatprep.subr.mxu0 0.0
    %684 = vmatpush1.msra.mxu0 0.0
    %685 = vmatprep.subr.mxu0 0.0
    %686 = vmatpush1.msra.mxu0 0.0
    %687 = vmatprep.subr.mxu0 0.0
    %688 = vmatpush1.msra.mxu0 0.0
    %689 = vmatprep.mubr.f32.mxu0 0.0
    %690 = vmatmul.mubr.f32.gmra.mrb[0].mxu0 %v552
    %v691 = vpop.f32.mrb[0].mxu0
    %v692 = vadd.f32 0.0, %v691
    %v693 = vpop.f32.mrb[0].mxu0
    %694 = vdwg.mxu0
    %v696 = vrot.slane %v692, 2
    %v698 = vadd.f32 %v140, %v696
    %v699 = vtanh.pop %v698
    %v700 = vxor.u32 %v698, 2147483648
    %v701 = vmul.f32 %v700, 1.442695
    %v702 = vpow.pop %v701
    %v703 = vadd.f32 %v702, 1.0
    %v704 = vrcp.pop %v703
    %v705 = vmul.f32 1.0, %v704
    %v706 = vsel %vm152, %v699, %v705
    %v708 = vrot.slane %v536, 6
    %v710 = vmul.f32 %v706, %v708
    %712 = vrot.lane.b32.xlu0 %v706, 64
    %v713 = vpop.permute.xlu0 %712
    %v715 = vmul.f32 %v706, %v713
    %717 = vrot.lane.b32.xlu0 %v715, 32
    %v718 = vpop.permute.xlu0 %717
    %v720 = vadd.f32 %v710, %v718
    %v721 = vtanh.pop %v720
    %723 = vrot.lane.b32.xlu0 %v721, 64
    %v724 = vpop.permute.xlu0 %723
    %v726 = vmul.f32 %v706, %v724
    %s727 = scalar_lea.vmem [#allocation4], 96
    %v728 = vld [vmem:[%s727] sm:$0xff]
    %v729 = vld [vmem:[%s727 + $0x8] sm:$0xff]
    %v730 = vld [vmem:[%s727 + $0x10] sm:$0xff]
    %v731 = vld [vmem:[%s727 + $0x18] sm:$0xff]
    %v733 = vrot.slane %v726, 6
    %734 = vrot.lane.b32.xlu0 %v733, 32
    %v735 = vpop.permute.xlu0 %734
    %v736 = vsel %vm185, %v735, 0
    %738 = vmatprep.subr.mxu0 0.0
    %739 = vmatpush1.msra.mxu0 %v728
    %740 = vmatprep.subr.mxu0 0.0
    %741 = vmatpush1.msra.mxu0 %v729
    %742 = vmatprep.subr.mxu0 0.0
    %743 = vmatpush1.msra.mxu0 %v730
    %744 = vmatprep.subr.mxu0 0.0
    %745 = vmatpush1.msra.mxu0 %v731
    %746 = vmatprep.subr.mxu0 0.0
    %747 = vmatpush1.msra.mxu0 0.0
    %748 = vmatprep.subr.mxu0 0.0
    %749 = vmatpush1.msra.mxu0 0.0
    %750 = vmatprep.subr.mxu0 0.0
    %751 = vmatpush1.msra.mxu0 0.0
    %752 = vmatprep.subr.mxu0 0.0
    %753 = vmatpush1.msra.mxu0 0.0
    %754 = vmatprep.subr.mxu0 0.0
    %755 = vmatpush1.msra.mxu0 0.0
    %756 = vmatprep.subr.mxu0 0.0
    %757 = vmatpush1.msra.mxu0 0.0
    %758 = vmatprep.subr.mxu0 0.0
    %759 = vmatpush1.msra.mxu0 0.0
    %760 = vmatprep.subr.mxu0 0.0
    %761 = vmatpush1.msra.mxu0 0.0
    %762 = vmatprep.subr.mxu0 0.0
    %763 = vmatpush1.msra.mxu0 0.0
    %764 = vmatprep.subr.mxu0 0.0
    %765 = vmatpush1.msra.mxu0 0.0
    %766 = vmatprep.subr.mxu0 0.0
    %767 = vmatpush1.msra.mxu0 0.0
    %768 = vmatprep.subr.mxu0 0.0
    %769 = vmatpush1.msra.mxu0 0.0
    %770 = vmatprep.subr.mxu0 0.0
    %771 = vmatpush1.msra.mxu0 0.0
    %772 = vmatprep.subr.mxu0 0.0
    %773 = vmatpush1.msra.mxu0 0.0
    %774 = vmatprep.subr.mxu0 0.0
    %775 = vmatpush1.msra.mxu0 0.0
    %776 = vmatprep.subr.mxu0 0.0
    %777 = vmatpush1.msra.mxu0 0.0
    %778 = vmatprep.subr.mxu0 0.0
    %779 = vmatpush1.msra.mxu0 0.0
    %780 = vmatprep.subr.mxu0 0.0
    %781 = vmatpush1.msra.mxu0 0.0
    %782 = vmatprep.subr.mxu0 0.0
    %783 = vmatpush1.msra.mxu0 0.0
    %784 = vmatprep.subr.mxu0 0.0
    %785 = vmatpush1.msra.mxu0 0.0
    %786 = vmatprep.subr.mxu0 0.0
    %787 = vmatpush1.msra.mxu0 0.0
    %788 = vmatprep.subr.mxu0 0.0
    %789 = vmatpush1.msra.mxu0 0.0
    %790 = vmatprep.subr.mxu0 0.0
    %791 = vmatpush1.msra.mxu0 0.0
    %792 = vmatprep.subr.mxu0 0.0
    %793 = vmatpush1.msra.mxu0 0.0
    %794 = vmatprep.subr.mxu0 0.0
    %795 = vmatpush1.msra.mxu0 0.0
    %796 = vmatprep.subr.mxu0 0.0
    %797 = vmatpush1.msra.mxu0 0.0
    %798 = vmatprep.subr.mxu0 0.0
    %799 = vmatpush1.msra.mxu0 0.0
    %800 = vmatprep.subr.mxu0 0.0
    %801 = vmatpush1.msra.mxu0 0.0
    %802 = vmatprep.mubr.f32.mxu0 0.0
    %803 = vmatmul.mubr.f32.gmra.mrb[0].mxu0 %v736
    %v804 = vpop.f32.mrb[0].mxu0
    %v805 = vadd.f32 0.0, %v804
    %v806 = vpop.f32.mrb[0].mxu0
    %807 = vdwg.mxu0
    %v808 = vadd.f32 %v624, %v805
    %809 = vmatprep.subr.mxu0 0.0
    %810 = vmatpush1.msra.mxu0 %v51
    %811 = vmatprep.subr.mxu0 0.0
    %812 = vmatpush1.msra.mxu0 %v52
    %813 = vmatprep.subr.mxu0 0.0
    %814 = vmatpush1.msra.mxu0 %v53
    %815 = vmatprep.subr.mxu0 0.0
    %816 = vmatpush1.msra.mxu0 %v54
    %817 = vmatprep.subr.mxu0 0.0
    %818 = vmatpush1.msra.mxu0 0.0
    %819 = vmatprep.subr.mxu0 0.0
    %820 = vmatpush1.msra.mxu0 0.0
    %821 = vmatprep.subr.mxu0 0.0
    %822 = vmatpush1.msra.mxu0 0.0
    %823 = vmatprep.subr.mxu0 0.0
    %824 = vmatpush1.msra.mxu0 0.0
    %825 = vmatprep.subr.mxu0 0.0
    %826 = vmatpush1.msra.mxu0 0.0
    %827 = vmatprep.subr.mxu0 0.0
    %828 = vmatpush1.msra.mxu0 0.0
    %829 = vmatprep.subr.mxu0 0.0
    %830 = vmatpush1.msra.mxu0 0.0
    %831 = vmatprep.subr.mxu0 0.0
    %832 = vmatpush1.msra.mxu0 0.0
    %833 = vmatprep.subr.mxu0 0.0
    %834 = vmatpush1.msra.mxu0 0.0
    %835 = vmatprep.subr.mxu0 0.0
    %836 = vmatpush1.msra.mxu0 0.0
    %837 = vmatprep.subr.mxu0 0.0
    %838 = vmatpush1.msra.mxu0 0.0
    %839 = vmatprep.subr.mxu0 0.0
    %840 = vmatpush1.msra.mxu0 0.0
    %841 = vmatprep.subr.mxu0 0.0
    %842 = vmatpush1.msra.mxu0 0.0
    %843 = vmatprep.subr.mxu0 0.0
    %844 = vmatpush1.msra.mxu0 0.0
    %845 = vmatprep.subr.mxu0 0.0
    %846 = vmatpush1.msra.mxu0 0.0
    %847 = vmatprep.subr.mxu0 0.0
    %848 = vmatpush1.msra.mxu0 0.0
    %849 = vmatprep.subr.mxu0 0.0
    %850 = vmatpush1.msra.mxu0 0.0
    %851 = vmatprep.subr.mxu0 0.0
    %852 = vmatpush1.msra.mxu0 0.0
    %853 = vmatprep.subr.mxu0 0.0
    %854 = vmatpush1.msra.mxu0 0.0
    %855 = vmatprep.subr.mxu0 0.0
    %856 = vmatpush1.msra.mxu0 0.0
    %857 = vmatprep.subr.mxu0 0.0
    %858 = vmatpush1.msra.mxu0 0.0
    %859 = vmatprep.subr.mxu0 0.0
    %860 = vmatpush1.msra.mxu0 0.0
    %861 = vmatprep.subr.mxu0 0.0
    %862 = vmatpush1.msra.mxu0 0.0
    %863 = vmatprep.subr.mxu0 0.0
    %864 = vmatpush1.msra.mxu0 0.0
    %865 = vmatprep.subr.mxu0 0.0
    %866 = vmatpush1.msra.mxu0 0.0
    %867 = vmatprep.subr.mxu0 0.0
    %868 = vmatpush1.msra.mxu0 0.0
    %869 = vmatprep.subr.mxu0 0.0
    %870 = vmatpush1.msra.mxu0 0.0
    %871 = vmatprep.subr.mxu0 0.0
    %872 = vmatpush1.msra.mxu0 0.0
    %873 = vmatprep.mubr.f32.mxu0 0.0
    %874 = vmatmul.mubr.f32.gmra.mrb[0].mxu0 %v736
    %v875 = vpop.f32.mrb[0].mxu0
    %v876 = vadd.f32 0.0, %v875
    %v877 = vpop.f32.mrb[0].mxu0
    %878 = vdwg.mxu0
    %v879 = vadd.f32 %v145, %v876
    %v880 = vtanh.pop %v879
    %v881 = vxor.u32 %v879, 2147483648
    %v882 = vmul.f32 %v881, 1.442695
    %v883 = vpow.pop %v882
    %v884 = vadd.f32 %v883, 1.0
    %v885 = vrcp.pop %v884
    %v886 = vmul.f32 1.0, %v885
    %v887 = vsel %vm152, %v880, %v886
    %v889 = vrot.slane %v720, 6
    %v891 = vmul.f32 %v887, %v889
    %893 = vrot.lane.b32.xlu0 %v887, 64
    %v894 = vpop.permute.xlu0 %893
    %v896 = vmul.f32 %v887, %v894
    %898 = vrot.lane.b32.xlu0 %v896, 32
    %v899 = vpop.permute.xlu0 %898
    %v901 = vadd.f32 %v891, %v899
    %v902 = vtanh.pop %v901
    %904 = vrot.lane.b32.xlu0 %v902, 64
    %v905 = vpop.permute.xlu0 %904
    %v907 = vmul.f32 %v887, %v905
    %s908 = scalar_lea.vmem [#allocation4], 128
    %v909 = vld [vmem:[%s908] sm:$0xff]
    %v910 = vld [vmem:[%s908 + $0x8] sm:$0xff]
    %v911 = vld [vmem:[%s908 + $0x10] sm:$0xff]
    %v912 = vld [vmem:[%s908 + $0x18] sm:$0xff]
    %914 = vrot.lane.b32.xlu0 %v907, 32
    %v915 = vpop.permute.xlu0 %914
    %v916 = vsel %vm185, %v915, 0
    %918 = vmatprep.subr.mxu0 0.0
    %919 = vmatpush1.msra.mxu0 %v909
    %920 = vmatprep.subr.mxu0 0.0
    %921 = vmatpush1.msra.mxu0 %v910
    %922 = vmatprep.subr.mxu0 0.0
    %923 = vmatpush1.msra.mxu0 %v911
    %924 = vmatprep.subr.mxu0 0.0
    %925 = vmatpush1.msra.mxu0 %v912
    %926 = vmatprep.subr.mxu0 0.0
    %927 = vmatpush1.msra.mxu0 0.0
    %928 = vmatprep.subr.mxu0 0.0
    %929 = vmatpush1.msra.mxu0 0.0
    %930 = vmatprep.subr.mxu0 0.0
    %931 = vmatpush1.msra.mxu0 0.0
    %932 = vmatprep.subr.mxu0 0.0
    %933 = vmatpush1.msra.mxu0 0.0
    %934 = vmatprep.subr.mxu0 0.0
    %935 = vmatpush1.msra.mxu0 0.0
    %936 = vmatprep.subr.mxu0 0.0
    %937 = vmatpush1.msra.mxu0 0.0
    %938 = vmatprep.subr.mxu0 0.0
    %939 = vmatpush1.msra.mxu0 0.0
    %940 = vmatprep.subr.mxu0 0.0
    %941 = vmatpush1.msra.mxu0 0.0
    %942 = vmatprep.subr.mxu0 0.0
    %943 = vmatpush1.msra.mxu0 0.0
    %944 = vmatprep.subr.mxu0 0.0
    %945 = vmatpush1.msra.mxu0 0.0
    %946 = vmatprep.subr.mxu0 0.0
    %947 = vmatpush1.msra.mxu0 0.0
    %948 = vmatprep.subr.mxu0 0.0
    %949 = vmatpush1.msra.mxu0 0.0
    %950 = vmatprep.subr.mxu0 0.0
    %951 = vmatpush1.msra.mxu0 0.0
    %952 = vmatprep.subr.mxu0 0.0
    %953 = vmatpush1.msra.mxu0 0.0
    %954 = vmatprep.subr.mxu0 0.0
    %955 = vmatpush1.msra.mxu0 0.0
    %956 = vmatprep.subr.mxu0 0.0
    %957 = vmatpush1.msra.mxu0 0.0
    %958 = vmatprep.subr.mxu0 0.0
    %959 = vmatpush1.msra.mxu0 0.0
    %960 = vmatprep.subr.mxu0 0.0
    %961 = vmatpush1.msra.mxu0 0.0
    %962 = vmatprep.subr.mxu0 0.0
    %963 = vmatpush1.msra.mxu0 0.0
    %964 = vmatprep.subr.mxu0 0.0
    %965 = vmatpush1.msra.mxu0 0.0
    %966 = vmatprep.subr.mxu0 0.0
    %967 = vmatpush1.msra.mxu0 0.0
    %968 = vmatprep.subr.mxu0 0.0
    %969 = vmatpush1.msra.mxu0 0.0
    %970 = vmatprep.subr.mxu0 0.0
    %971 = vmatpush1.msra.mxu0 0.0
    %972 = vmatprep.subr.mxu0 0.0
    %973 = vmatpush1.msra.mxu0 0.0
    %974 = vmatprep.subr.mxu0 0.0
    %975 = vmatpush1.msra.mxu0 0.0
    %976 = vmatprep.subr.mxu0 0.0
    %977 = vmatpush1.msra.mxu0 0.0
    %978 = vmatprep.subr.mxu0 0.0
    %979 = vmatpush1.msra.mxu0 0.0
    %980 = vmatprep.subr.mxu0 0.0
    %981 = vmatpush1.msra.mxu0 0.0
    %982 = vmatprep.mubr.f32.mxu0 0.0
    %983 = vmatmul.mubr.f32.gmra.mrb[0].mxu0 %v916
    %v984 = vpop.f32.mrb[0].mxu0
    %v985 = vadd.f32 0.0, %v984
    %v986 = vpop.f32.mrb[0].mxu0
    %987 = vdwg.mxu0
    %v988 = vadd.f32 %v808, %v985
    %989 = vmatprep.subr.mxu0 0.0
    %990 = vmatpush1.msra.mxu0 %v51
    %991 = vmatprep.subr.mxu0 0.0
    %992 = vmatpush1.msra.mxu0 %v52
    %993 = vmatprep.subr.mxu0 0.0
    %994 = vmatpush1.msra.mxu0 %v53
    %995 = vmatprep.subr.mxu0 0.0
    %996 = vmatpush1.msra.mxu0 %v54
    %997 = vmatprep.subr.mxu0 0.0
    %998 = vmatpush1.msra.mxu0 0.0
    %999 = vmatprep.subr.mxu0 0.0
    %1000 = vmatpush1.msra.mxu0 0.0
    %1001 = vmatprep.subr.mxu0 0.0
    %1002 = vmatpush1.msra.mxu0 0.0
    %1003 = vmatprep.subr.mxu0 0.0
    %1004 = vmatpush1.msra.mxu0 0.0
    %1005 = vmatprep.subr.mxu0 0.0
    %1006 = vmatpush1.msra.mxu0 0.0
    %1007 = vmatprep.subr.mxu0 0.0
    %1008 = vmatpush1.msra.mxu0 0.0
    %1009 = vmatprep.subr.mxu0 0.0
    %1010 = vmatpush1.msra.mxu0 0.0
    %1011 = vmatprep.subr.mxu0 0.0
    %1012 = vmatpush1.msra.mxu0 0.0
    %1013 = vmatprep.subr.mxu0 0.0
    %1014 = vmatpush1.msra.mxu0 0.0
    %1015 = vmatprep.subr.mxu0 0.0
    %1016 = vmatpush1.msra.mxu0 0.0
    %1017 = vmatprep.subr.mxu0 0.0
    %1018 = vmatpush1.msra.mxu0 0.0
    %1019 = vmatprep.subr.mxu0 0.0
    %1020 = vmatpush1.msra.mxu0 0.0
    %1021 = vmatprep.subr.mxu0 0.0
    %1022 = vmatpush1.msra.mxu0 0.0
    %1023 = vmatprep.subr.mxu0 0.0
    %1024 = vmatpush1.msra.mxu0 0.0
    %1025 = vmatprep.subr.mxu0 0.0
    %1026 = vmatpush1.msra.mxu0 0.0
    %1027 = vmatprep.subr.mxu0 0.0
    %1028 = vmatpush1.msra.mxu0 0.0
    %1029 = vmatprep.subr.mxu0 0.0
    %1030 = vmatpush1.msra.mxu0 0.0
    %1031 = vmatprep.subr.mxu0 0.0
    %1032 = vmatpush1.msra.mxu0 0.0
    %1033 = vmatprep.subr.mxu0 0.0
    %1034 = vmatpush1.msra.mxu0 0.0
    %1035 = vmatprep.subr.mxu0 0.0
    %1036 = vmatpush1.msra.mxu0 0.0
    %1037 = vmatprep.subr.mxu0 0.0
    %1038 = vmatpush1.msra.mxu0 0.0
    %1039 = vmatprep.subr.mxu0 0.0
    %1040 = vmatpush1.msra.mxu0 0.0
    %1041 = vmatprep.subr.mxu0 0.0
    %1042 = vmatpush1.msra.mxu0 0.0
    %1043 = vmatprep.subr.mxu0 0.0
    %1044 = vmatpush1.msra.mxu0 0.0
    %1045 = vmatprep.subr.mxu0 0.0
    %1046 = vmatpush1.msra.mxu0 0.0
    %1047 = vmatprep.subr.mxu0 0.0
    %1048 = vmatpush1.msra.mxu0 0.0
    %1049 = vmatprep.subr.mxu0 0.0
    %1050 = vmatpush1.msra.mxu0 0.0
    %1051 = vmatprep.subr.mxu0 0.0
    %1052 = vmatpush1.msra.mxu0 0.0
    %1053 = vmatprep.mubr.f32.mxu0 0.0
    %1054 = vmatmul.mubr.f32.gmra.mrb[0].mxu0 %v916
    %v1055 = vpop.f32.mrb[0].mxu0
    %v1056 = vadd.f32 0.0, %v1055
    %v1057 = vpop.f32.mrb[0].mxu0
    %1058 = vdwg.mxu0
    %v1060 = vrot.slane %v1056, 6
    %v1062 = vadd.f32 %v145, %v1060
    %v1063 = vtanh.pop %v1062
    %v1064 = vxor.u32 %v1062, 2147483648
    %v1065 = vmul.f32 %v1064, 1.442695
    %v1066 = vpow.pop %v1065
    %v1067 = vadd.f32 %v1066, 1.0
    %v1068 = vrcp.pop %v1067
    %v1069 = vmul.f32 1.0, %v1068
    %v1070 = vsel %vm152, %v1063, %v1069
    %v1072 = vrot.slane %v901, 6
    %v1074 = vmul.f32 %v1070, %v1072
    %1076 = vrot.lane.b32.xlu0 %v1070, 64
    %v1077 = vpop.permute.xlu0 %1076
    %v1079 = vmul.f32 %v1070, %v1077
    %1081 = vrot.lane.b32.xlu0 %v1079, 32
    %v1082 = vpop.permute.xlu0 %1081
    %v1084 = vadd.f32 %v1074, %v1082
    %v1085 = vtanh.pop %v1084
    %1087 = vrot.lane.b32.xlu0 %v1085, 64
    %v1088 = vpop.permute.xlu0 %1087
    %v1090 = vmul.f32 %v1070, %v1088
    %s1091 = scalar_lea.vmem [#allocation4], 160
    %v1092 = vld [vmem:[%s1091] sm:$0xff]
    %v1093 = vld [vmem:[%s1091 + $0x8] sm:$0xff]
    %v1094 = vld [vmem:[%s1091 + $0x10] sm:$0xff]
    %v1095 = vld [vmem:[%s1091 + $0x18] sm:$0xff]
    %v1097 = vrot.slane %v1090, 2
    %1098 = vrot.lane.b32.xlu0 %v1097, 32
    %v1099 = vpop.permute.xlu0 %1098
    %v1100 = vsel %vm185, %v1099, 0
    %1102 = vmatprep.subr.mxu0 0.0
    %1103 = vmatpush1.msra.mxu0 %v1092
    %1104 = vmatprep.subr.mxu0 0.0
    %1105 = vmatpush1.msra.mxu0 %v1093
    %1106 = vmatprep.subr.mxu0 0.0
    %1107 = vmatpush1.msra.mxu0 %v1094
    %1108 = vmatprep.subr.mxu0 0.0
    %1109 = vmatpush1.msra.mxu0 %v1095
    %1110 = vmatprep.subr.mxu0 0.0
    %1111 = vmatpush1.msra.mxu0 0.0
    %1112 = vmatprep.subr.mxu0 0.0
    %1113 = vmatpush1.msra.mxu0 0.0
    %1114 = vmatprep.subr.mxu0 0.0
    %1115 = vmatpush1.msra.mxu0 0.0
    %1116 = vmatprep.subr.mxu0 0.0
    %1117 = vmatpush1.msra.mxu0 0.0
    %1118 = vmatprep.subr.mxu0 0.0
    %1119 = vmatpush1.msra.mxu0 0.0
    %1120 = vmatprep.subr.mxu0 0.0
    %1121 = vmatpush1.msra.mxu0 0.0
    %1122 = vmatprep.subr.mxu0 0.0
    %1123 = vmatpush1.msra.mxu0 0.0
    %1124 = vmatprep.subr.mxu0 0.0
    %1125 = vmatpush1.msra.mxu0 0.0
    %1126 = vmatprep.subr.mxu0 0.0
    %1127 = vmatpush1.msra.mxu0 0.0
    %1128 = vmatprep.subr.mxu0 0.0
    %1129 = vmatpush1.msra.mxu0 0.0
    %1130 = vmatprep.subr.mxu0 0.0
    %1131 = vmatpush1.msra.mxu0 0.0
    %1132 = vmatprep.subr.mxu0 0.0
    %1133 = vmatpush1.msra.mxu0 0.0
    %1134 = vmatprep.subr.mxu0 0.0
    %1135 = vmatpush1.msra.mxu0 0.0
    %1136 = vmatprep.subr.mxu0 0.0
    %1137 = vmatpush1.msra.mxu0 0.0
    %1138 = vmatprep.subr.mxu0 0.0
    %1139 = vmatpush1.msra.mxu0 0.0
    %1140 = vmatprep.subr.mxu0 0.0
    %1141 = vmatpush1.msra.mxu0 0.0
    %1142 = vmatprep.subr.mxu0 0.0
    %1143 = vmatpush1.msra.mxu0 0.0
    %1144 = vmatprep.subr.mxu0 0.0
    %1145 = vmatpush1.msra.mxu0 0.0
    %1146 = vmatprep.subr.mxu0 0.0
    %1147 = vmatpush1.msra.mxu0 0.0
    %1148 = vmatprep.subr.mxu0 0.0
    %1149 = vmatpush1.msra.mxu0 0.0
    %1150 = vmatprep.subr.mxu0 0.0
    %1151 = vmatpush1.msra.mxu0 0.0
    %1152 = vmatprep.subr.mxu0 0.0
    %1153 = vmatpush1.msra.mxu0 0.0
    %1154 = vmatprep.subr.mxu0 0.0
    %1155 = vmatpush1.msra.mxu0 0.0
    %1156 = vmatprep.subr.mxu0 0.0
    %1157 = vmatpush1.msra.mxu0 0.0
    %1158 = vmatprep.subr.mxu0 0.0
    %1159 = vmatpush1.msra.mxu0 0.0
    %1160 = vmatprep.subr.mxu0 0.0
    %1161 = vmatpush1.msra.mxu0 0.0
    %1162 = vmatprep.subr.mxu0 0.0
    %1163 = vmatpush1.msra.mxu0 0.0
    %1164 = vmatprep.subr.mxu0 0.0
    %1165 = vmatpush1.msra.mxu0 0.0
    %1166 = vmatprep.mubr.f32.mxu0 0.0
    %1167 = vmatmul.mubr.f32.gmra.mrb[0].mxu0 %v1100
    %v1168 = vpop.f32.mrb[0].mxu0
    %v1169 = vadd.f32 0.0, %v1168
    %v1170 = vpop.f32.mrb[0].mxu0
    %1171 = vdwg.mxu0
    %v1172 = vadd.f32 %v988, %v1169
    %1173 = vmatprep.subr.mxu0 0.0
    %1174 = vmatpush1.msra.mxu0 %v51
    %1175 = vmatprep.subr.mxu0 0.0
    %1176 = vmatpush1.msra.mxu0 %v52
    %1177 = vmatprep.subr.mxu0 0.0
    %1178 = vmatpush1.msra.mxu0 %v53
    %1179 = vmatprep.subr.mxu0 0.0
    %1180 = vmatpush1.msra.mxu0 %v54
    %1181 = vmatprep.subr.mxu0 0.0
    %1182 = vmatpush1.msra.mxu0 0.0
    %1183 = vmatprep.subr.mxu0 0.0
    %1184 = vmatpush1.msra.mxu0 0.0
    %1185 = vmatprep.subr.mxu0 0.0
    %1186 = vmatpush1.msra.mxu0 0.0
    %1187 = vmatprep.subr.mxu0 0.0
    %1188 = vmatpush1.msra.mxu0 0.0
    %1189 = vmatprep.subr.mxu0 0.0
    %1190 = vmatpush1.msra.mxu0 0.0
    %1191 = vmatprep.subr.mxu0 0.0
    %1192 = vmatpush1.msra.mxu0 0.0
    %1193 = vmatprep.subr.mxu0 0.0
    %1194 = vmatpush1.msra.mxu0 0.0
    %1195 = vmatprep.subr.mxu0 0.0
    %1196 = vmatpush1.msra.mxu0 0.0
    %1197 = vmatprep.subr.mxu0 0.0
    %1198 = vmatpush1.msra.mxu0 0.0
    %1199 = vmatprep.subr.mxu0 0.0
    %1200 = vmatpush1.msra.mxu0 0.0
    %1201 = vmatprep.subr.mxu0 0.0
    %1202 = vmatpush1.msra.mxu0 0.0
    %1203 = vmatprep.subr.mxu0 0.0
    %1204 = vmatpush1.msra.mxu0 0.0
    %1205 = vmatprep.subr.mxu0 0.0
    %1206 = vmatpush1.msra.mxu0 0.0
    %1207 = vmatprep.subr.mxu0 0.0
    %1208 = vmatpush1.msra.mxu0 0.0
    %1209 = vmatprep.subr.mxu0 0.0
    %1210 = vmatpush1.msra.mxu0 0.0
    %1211 = vmatprep.subr.mxu0 0.0
    %1212 = vmatpush1.msra.mxu0 0.0
    %1213 = vmatprep.subr.mxu0 0.0
    %1214 = vmatpush1.msra.mxu0 0.0
    %1215 = vmatprep.subr.mxu0 0.0
    %1216 = vmatpush1.msra.mxu0 0.0
    %1217 = vmatprep.subr.mxu0 0.0
    %1218 = vmatpush1.msra.mxu0 0.0
    %1219 = vmatprep.subr.mxu0 0.0
    %1220 = vmatpush1.msra.mxu0 0.0
    %1221 = vmatprep.subr.mxu0 0.0
    %1222 = vmatpush1.msra.mxu0 0.0
    %1223 = vmatprep.subr.mxu0 0.0
    %1224 = vmatpush1.msra.mxu0 0.0
    %1225 = vmatprep.subr.mxu0 0.0
    %1226 = vmatpush1.msra.mxu0 0.0
    %1227 = vmatprep.subr.mxu0 0.0
    %1228 = vmatpush1.msra.mxu0 0.0
    %1229 = vmatprep.subr.mxu0 0.0
    %1230 = vmatpush1.msra.mxu0 0.0
    %1231 = vmatprep.subr.mxu0 0.0
    %1232 = vmatpush1.msra.mxu0 0.0
    %1233 = vmatprep.subr.mxu0 0.0
    %1234 = vmatpush1.msra.mxu0 0.0
    %1235 = vmatprep.subr.mxu0 0.0
    %1236 = vmatpush1.msra.mxu0 0.0
    %1237 = vmatprep.mubr.f32.mxu0 0.0
    %1238 = vmatmul.mubr.f32.gmra.mrb[0].mxu0 %v1100
    %v1239 = vpop.f32.mrb[0].mxu0
    %v1240 = vadd.f32 0.0, %v1239
    %v1241 = vpop.f32.mrb[0].mxu0
    %1242 = vdwg.mxu0
    %v1244 = vrot.slane %v1240, 4
    %v1246 = vadd.f32 %v145, %v1244
    %v1247 = vtanh.pop %v1246
    %v1248 = vxor.u32 %v1246, 2147483648
    %v1249 = vmul.f32 %v1248, 1.442695
    %v1250 = vpow.pop %v1249
    %v1251 = vadd.f32 %v1250, 1.0
    %v1252 = vrcp.pop %v1251
    %v1253 = vmul.f32 1.0, %v1252
    %v1254 = vsel %vm152, %v1247, %v1253
    %v1256 = vrot.slane %v1084, 6
    %v1258 = vmul.f32 %v1254, %v1256
    %1260 = vrot.lane.b32.xlu0 %v1254, 64
    %v1261 = vpop.permute.xlu0 %1260
    %v1263 = vmul.f32 %v1254, %v1261
    %1265 = vrot.lane.b32.xlu0 %v1263, 32
    %v1266 = vpop.permute.xlu0 %1265
    %v1268 = vadd.f32 %v1258, %v1266
    %v1269 = vtanh.pop %v1268
    %1271 = vrot.lane.b32.xlu0 %v1269, 64
    %v1272 = vpop.permute.xlu0 %1271
    %v1274 = vmul.f32 %v1254, %v1272
    %s1275 = scalar_lea.vmem [#allocation4], 192
    %v1276 = vld [vmem:[%s1275] sm:$0xff]
    %v1277 = vld [vmem:[%s1275 + $0x8] sm:$0xff]
    %v1278 = vld [vmem:[%s1275 + $0x10] sm:$0xff]
    %v1279 = vld [vmem:[%s1275 + $0x18] sm:$0xff]
    %v1281 = vrot.slane %v1274, 4
    %1282 = vrot.lane.b32.xlu0 %v1281, 32
    %v1283 = vpop.permute.xlu0 %1282
    %v1284 = vsel %vm185, %v1283, 0
    %1286 = vmatprep.subr.mxu0 0.0
    %1287 = vmatpush1.msra.mxu0 %v1276
    %1288 = vmatprep.subr.mxu0 0.0
    %1289 = vmatpush1.msra.mxu0 %v1277
    %1290 = vmatprep.subr.mxu0 0.0
    %1291 = vmatpush1.msra.mxu0 %v1278
    %1292 = vmatprep.subr.mxu0 0.0
    %1293 = vmatpush1.msra.mxu0 %v1279
    %1294 = vmatprep.subr.mxu0 0.0
    %1295 = vmatpush1.msra.mxu0 0.0
    %1296 = vmatprep.subr.mxu0 0.0
    %1297 = vmatpush1.msra.mxu0 0.0
    %1298 = vmatprep.subr.mxu0 0.0
    %1299 = vmatpush1.msra.mxu0 0.0
    %1300 = vmatprep.subr.mxu0 0.0
    %1301 = vmatpush1.msra.mxu0 0.0
    %1302 = vmatprep.subr.mxu0 0.0
    %1303 = vmatpush1.msra.mxu0 0.0
    %1304 = vmatprep.subr.mxu0 0.0
    %1305 = vmatpush1.msra.mxu0 0.0
    %1306 = vmatprep.subr.mxu0 0.0
    %1307 = vmatpush1.msra.mxu0 0.0
    %1308 = vmatprep.subr.mxu0 0.0
    %1309 = vmatpush1.msra.mxu0 0.0
    %1310 = vmatprep.subr.mxu0 0.0
    %1311 = vmatpush1.msra.mxu0 0.0
    %1312 = vmatprep.subr.mxu0 0.0
    %1313 = vmatpush1.msra.mxu0 0.0
    %1314 = vmatprep.subr.mxu0 0.0
    %1315 = vmatpush1.msra.mxu0 0.0
    %1316 = vmatprep.subr.mxu0 0.0
    %1317 = vmatpush1.msra.mxu0 0.0
    %1318 = vmatprep.subr.mxu0 0.0
    %1319 = vmatpush1.msra.mxu0 0.0
    %1320 = vmatprep.subr.mxu0 0.0
    %1321 = vmatpush1.msra.mxu0 0.0
    %1322 = vmatprep.subr.mxu0 0.0
    %1323 = vmatpush1.msra.mxu0 0.0
    %1324 = vmatprep.subr.mxu0 0.0
    %1325 = vmatpush1.msra.mxu0 0.0
    %1326 = vmatprep.subr.mxu0 0.0
    %1327 = vmatpush1.msra.mxu0 0.0
    %1328 = vmatprep.subr.mxu0 0.0
    %1329 = vmatpush1.msra.mxu0 0.0
    %1330 = vmatprep.subr.mxu0 0.0
    %1331 = vmatpush1.msra.mxu0 0.0
    %1332 = vmatprep.subr.mxu0 0.0
    %1333 = vmatpush1.msra.mxu0 0.0
    %1334 = vmatprep.subr.mxu0 0.0
    %1335 = vmatpush1.msra.mxu0 0.0
    %1336 = vmatprep.subr.mxu0 0.0
    %1337 = vmatpush1.msra.mxu0 0.0
    %1338 = vmatprep.subr.mxu0 0.0
    %1339 = vmatpush1.msra.mxu0 0.0
    %1340 = vmatprep.subr.mxu0 0.0
    %1341 = vmatpush1.msra.mxu0 0.0
    %1342 = vmatprep.subr.mxu0 0.0
    %1343 = vmatpush1.msra.mxu0 0.0
    %1344 = vmatprep.subr.mxu0 0.0
    %1345 = vmatpush1.msra.mxu0 0.0
    %1346 = vmatprep.subr.mxu0 0.0
    %1347 = vmatpush1.msra.mxu0 0.0
    %1348 = vmatprep.subr.mxu0 0.0
    %1349 = vmatpush1.msra.mxu0 0.0
    %1350 = vmatprep.mubr.f32.mxu0 0.0
    %1351 = vmatmul.mubr.f32.gmra.mrb[0].mxu0 %v1284
    %v1352 = vpop.f32.mrb[0].mxu0
    %v1353 = vadd.f32 0.0, %v1352
    %v1354 = vpop.f32.mrb[0].mxu0
    %1355 = vdwg.mxu0
    %v1356 = vadd.f32 %v1172, %v1353
    %1357 = vmatprep.subr.mxu0 0.0
    %1358 = vmatpush1.msra.mxu0 %v51
    %1359 = vmatprep.subr.mxu0 0.0
    %1360 = vmatpush1.msra.mxu0 %v52
    %1361 = vmatprep.subr.mxu0 0.0
    %1362 = vmatpush1.msra.mxu0 %v53
    %1363 = vmatprep.subr.mxu0 0.0
    %1364 = vmatpush1.msra.mxu0 %v54
    %1365 = vmatprep.subr.mxu0 0.0
    %1366 = vmatpush1.msra.mxu0 0.0
    %1367 = vmatprep.subr.mxu0 0.0
    %1368 = vmatpush1.msra.mxu0 0.0
    %1369 = vmatprep.subr.mxu0 0.0
    %1370 = vmatpush1.msra.mxu0 0.0
    %1371 = vmatprep.subr.mxu0 0.0
    %1372 = vmatpush1.msra.mxu0 0.0
    %1373 = vmatprep.subr.mxu0 0.0
    %1374 = vmatpush1.msra.mxu0 0.0
    %1375 = vmatprep.subr.mxu0 0.0
    %1376 = vmatpush1.msra.mxu0 0.0
    %1377 = vmatprep.subr.mxu0 0.0
    %1378 = vmatpush1.msra.mxu0 0.0
    %1379 = vmatprep.subr.mxu0 0.0
    %1380 = vmatpush1.msra.mxu0 0.0
    %1381 = vmatprep.subr.mxu0 0.0
    %1382 = vmatpush1.msra.mxu0 0.0
    %1383 = vmatprep.subr.mxu0 0.0
    %1384 = vmatpush1.msra.mxu0 0.0
    %1385 = vmatprep.subr.mxu0 0.0
    %1386 = vmatpush1.msra.mxu0 0.0
    %1387 = vmatprep.subr.mxu0 0.0
    %1388 = vmatpush1.msra.mxu0 0.0
    %1389 = vmatprep.subr.mxu0 0.0
    %1390 = vmatpush1.msra.mxu0 0.0
    %1391 = vmatprep.subr.mxu0 0.0
    %1392 = vmatpush1.msra.mxu0 0.0
    %1393 = vmatprep.subr.mxu0 0.0
    %1394 = vmatpush1.msra.mxu0 0.0
    %1395 = vmatprep.subr.mxu0 0.0
    %1396 = vmatpush1.msra.mxu0 0.0
    %1397 = vmatprep.subr.mxu0 0.0
    %1398 = vmatpush1.msra.mxu0 0.0
    %1399 = vmatprep.subr.mxu0 0.0
    %1400 = vmatpush1.msra.mxu0 0.0
    %1401 = vmatprep.subr.mxu0 0.0
    %1402 = vmatpush1.msra.mxu0 0.0
    %1403 = vmatprep.subr.mxu0 0.0
    %1404 = vmatpush1.msra.mxu0 0.0
    %1405 = vmatprep.subr.mxu0 0.0
    %1406 = vmatpush1.msra.mxu0 0.0
    %1407 = vmatprep.subr.mxu0 0.0
    %1408 = vmatpush1.msra.mxu0 0.0
    %1409 = vmatprep.subr.mxu0 0.0
    %1410 = vmatpush1.msra.mxu0 0.0
    %1411 = vmatprep.subr.mxu0 0.0
    %1412 = vmatpush1.msra.mxu0 0.0
    %1413 = vmatprep.subr.mxu0 0.0
    %1414 = vmatpush1.msra.mxu0 0.0
    %1415 = vmatprep.subr.mxu0 0.0
    %1416 = vmatpush1.msra.mxu0 0.0
    %1417 = vmatprep.subr.mxu0 0.0
    %1418 = vmatpush1.msra.mxu0 0.0
    %1419 = vmatprep.subr.mxu0 0.0
    %1420 = vmatpush1.msra.mxu0 0.0
    %1421 = vmatprep.mubr.f32.mxu0 0.0
    %1422 = vmatmul.mubr.f32.gmra.mrb[0].mxu0 %v1284
    %v1423 = vpop.f32.mrb[0].mxu0
    %v1424 = vadd.f32 0.0, %v1423
    %v1425 = vpop.f32.mrb[0].mxu0
    %1426 = vdwg.mxu0
    %v1428 = vrot.slane %v1424, 2
    %v1430 = vadd.f32 %v145, %v1428
    %v1431 = vtanh.pop %v1430
    %v1432 = vxor.u32 %v1430, 2147483648
    %v1433 = vmul.f32 %v1432, 1.442695
    %v1434 = vpow.pop %v1433
    %v1435 = vadd.f32 %v1434, 1.0
    %v1436 = vrcp.pop %v1435
    %v1437 = vmul.f32 1.0, %v1436
    %v1438 = vsel %vm152, %v1431, %v1437
    %v1440 = vrot.slane %v1268, 6
    %v1442 = vmul.f32 %v1438, %v1440
    %1444 = vrot.lane.b32.xlu0 %v1438, 64
    %v1445 = vpop.permute.xlu0 %1444
    %v1447 = vmul.f32 %v1438, %v1445
    %1449 = vrot.lane.b32.xlu0 %v1447, 32
    %v1450 = vpop.permute.xlu0 %1449
    %v1452 = vadd.f32 %v1442, %v1450
    %v1453 = vtanh.pop %v1452
    %1455 = vrot.lane.b32.xlu0 %v1453, 64
    %v1456 = vpop.permute.xlu0 %1455
    %v1458 = vmul.f32 %v1438, %v1456
    %s1459 = scalar_lea.vmem [#allocation4], 224
    %v1460 = vld [vmem:[%s1459] sm:$0xff]
    %v1461 = vld [vmem:[%s1459 + $0x8] sm:$0xff]
    %v1462 = vld [vmem:[%s1459 + $0x10] sm:$0xff]
    %v1463 = vld [vmem:[%s1459 + $0x18] sm:$0xff]
    %v1465 = vrot.slane %v1458, 6
    %1466 = vrot.lane.b32.xlu0 %v1465, 32
    %v1467 = vpop.permute.xlu0 %1466
    %v1468 = vsel %vm185, %v1467, 0
    %1470 = vmatprep.subr.mxu0 0.0
    %1471 = vmatpush1.msra.mxu0 %v1460
    %1472 = vmatprep.subr.mxu0 0.0
    %1473 = vmatpush1.msra.mxu0 %v1461
    %1474 = vmatprep.subr.mxu0 0.0
    %1475 = vmatpush1.msra.mxu0 %v1462
    %1476 = vmatprep.subr.mxu0 0.0
    %1477 = vmatpush1.msra.mxu0 %v1463
    %1478 = vmatprep.subr.mxu0 0.0
    %1479 = vmatpush1.msra.mxu0 0.0
    %1480 = vmatprep.subr.mxu0 0.0
    %1481 = vmatpush1.msra.mxu0 0.0
    %1482 = vmatprep.subr.mxu0 0.0
    %1483 = vmatpush1.msra.mxu0 0.0
    %1484 = vmatprep.subr.mxu0 0.0
    %1485 = vmatpush1.msra.mxu0 0.0
    %1486 = vmatprep.subr.mxu0 0.0
    %1487 = vmatpush1.msra.mxu0 0.0
    %1488 = vmatprep.subr.mxu0 0.0
    %1489 = vmatpush1.msra.mxu0 0.0
    %1490 = vmatprep.subr.mxu0 0.0
    %1491 = vmatpush1.msra.mxu0 0.0
    %1492 = vmatprep.subr.mxu0 0.0
    %1493 = vmatpush1.msra.mxu0 0.0
    %1494 = vmatprep.subr.mxu0 0.0
    %1495 = vmatpush1.msra.mxu0 0.0
    %1496 = vmatprep.subr.mxu0 0.0
    %1497 = vmatpush1.msra.mxu0 0.0
    %1498 = vmatprep.subr.mxu0 0.0
    %1499 = vmatpush1.msra.mxu0 0.0
    %1500 = vmatprep.subr.mxu0 0.0
    %1501 = vmatpush1.msra.mxu0 0.0
    %1502 = vmatprep.subr.mxu0 0.0
    %1503 = vmatpush1.msra.mxu0 0.0
    %1504 = vmatprep.subr.mxu0 0.0
    %1505 = vmatpush1.msra.mxu0 0.0
    %1506 = vmatprep.subr.mxu0 0.0
    %1507 = vmatpush1.msra.mxu0 0.0
    %1508 = vmatprep.subr.mxu0 0.0
    %1509 = vmatpush1.msra.mxu0 0.0
    %1510 = vmatprep.subr.mxu0 0.0
    %1511 = vmatpush1.msra.mxu0 0.0
    %1512 = vmatprep.subr.mxu0 0.0
    %1513 = vmatpush1.msra.mxu0 0.0
    %1514 = vmatprep.subr.mxu0 0.0
    %1515 = vmatpush1.msra.mxu0 0.0
    %1516 = vmatprep.subr.mxu0 0.0
    %1517 = vmatpush1.msra.mxu0 0.0
    %1518 = vmatprep.subr.mxu0 0.0
    %1519 = vmatpush1.msra.mxu0 0.0
    %1520 = vmatprep.subr.mxu0 0.0
    %1521 = vmatpush1.msra.mxu0 0.0
    %1522 = vmatprep.subr.mxu0 0.0
    %1523 = vmatpush1.msra.mxu0 0.0
    %1524 = vmatprep.subr.mxu0 0.0
    %1525 = vmatpush1.msra.mxu0 0.0
    %1526 = vmatprep.subr.mxu0 0.0
    %1527 = vmatpush1.msra.mxu0 0.0
    %1528 = vmatprep.subr.mxu0 0.0
    %1529 = vmatpush1.msra.mxu0 0.0
    %1530 = vmatprep.subr.mxu0 0.0
    %1531 = vmatpush1.msra.mxu0 0.0
    %1532 = vmatprep.subr.mxu0 0.0
    %1533 = vmatpush1.msra.mxu0 0.0
    %1534 = vmatprep.mubr.f32.mxu0 0.0
    %1535 = vmatmul.mubr.f32.gmra.mrb[0].mxu0 %v1468
    %v1536 = vpop.f32.mrb[0].mxu0
    %v1537 = vadd.f32 0.0, %v1536
    %v1538 = vpop.f32.mrb[0].mxu0
    %1539 = vdwg.mxu0
    %v1540 = vadd.f32 %v1356, %v1537
    %v1541 = vld [vmem:[%s5] sm:$0x1]
    %v1543 = vlaneseq
    %v1544 = vshrl.u32 %v1543, 7
    %v1545 = vsub.s32 0, %v1544
    %v1546 = vrot.slane %v1541, %v1545
    %v1548 = vadd.f32 %v1540, %v1546
    %1549 = vst [vmem:[%s6] sm:$0x3] %v1548
    // Predicated region
    $region34: #{seq2seq4_forward.1} parent=1 // pred_check
      _
    $region35: #{seq2seq4_forward.1} parent=1 // pred_check_branch
      %1551 = sbr.rel (0) target = $region37
    $region36: #{seq2seq4_forward.1} parent=1 // pred_region
      _
    $region37: #{seq2seq4_forward.1} parent=1 // pred_fallthru
      _
    // Predicated region
    $region38: #{seq2seq4_forward.1} parent=1 // pred_check
      _
    $region39: #{seq2seq4_forward.1} parent=1 // pred_check_branch
      %1553 = sbr.rel (0) target = $region41
    $region40: #{seq2seq4_forward.1} parent=1 // pred_region
      _
    $region41: #{seq2seq4_forward.1} parent=1 // pred_fallthru
      _
    %1554 = vsyncpa [#allocation3], 1
    %1555 = vsyncpa [#allocation5], 1

</llo_original>
